<compile_context>
chip_gen: v7x
topology: tpu7x:2x2x1
jax: 0.10.0
libtpu: 0.0.40
codegen_flags: <defaults>
</compile_context>

<pallas_src>
import jax
import jax.numpy as jnp
from jax.experimental import pallas as pl
from jax.experimental.pallas import tpu as pltpu

INPUT_DIM = 13
HIDDEN_DIM = 32
OUTPUT_DIM = 1
N_NODES = 64
N_EDGES = 128
N_GRAPHS = 2
BN_EPS = 1e-5

# ---- packed parameter slab layout (row offsets 8-aligned, 64 lanes wide) ----
SLAB_COLS = 2 * HIDDEN_DIM          # 64
R_W1     = 0                        # (Din, Dh)
R_W2     = 16                      # (Dh, Dh)
R_WC1_IH = 48                      # (Dh, 2Dh)  = wc1[x_i : H]  - wc1[(x_j-x_i) : H]
R_WC1_IX = 80                      # (Din, 2Dh) = wc1[x_i : xn] - wc1[(x_j-x_i) : xn]
R_WC1_JH = 96                      # (Dh, 2Dh)  = wc1[(x_j-x_i) : H]
R_WC1_JX = 128                     # (Din, 2Dh) = wc1[(x_j-x_i) : xn]
R_WC2    = 144                     # (2Dh, Dh)
R_WO1_H  = 208                     # (Dh, Dh)
R_WO1_X  = 240                     # (Din, Dh)
R_WO2    = 256                     # (Dh, 1)
R_BIAS   = 288                     # 8 rows: gamma, beta, b1, b2, bc1, bc2, bo1, bo2
SLAB_ROWS = 296


def edgenet_kernel(x_ref, srcdst_ref, idx_ref, p_ref, out_ref):
    x = x_ref[...]                                          # (N, Din) f32
    n_nodes = x.shape[0]
    n_edges = srcdst_ref.shape[0] // 2
    n_graphs = out_ref.shape[0]

    # --- static parameter views from the packed slab ------------------------
    w1     = p_ref[pl.ds(R_W1, INPUT_DIM),       pl.ds(0, HIDDEN_DIM)]
    w2     = p_ref[pl.ds(R_W2, HIDDEN_DIM),      pl.ds(0, HIDDEN_DIM)]
    wc1_iH = p_ref[pl.ds(R_WC1_IH, HIDDEN_DIM),  pl.ds(0, 2 * HIDDEN_DIM)]
    wc1_ix = p_ref[pl.ds(R_WC1_IX, INPUT_DIM),   pl.ds(0, 2 * HIDDEN_DIM)]
    wc1_jH = p_ref[pl.ds(R_WC1_JH, HIDDEN_DIM),  pl.ds(0, 2 * HIDDEN_DIM)]
    wc1_jx = p_ref[pl.ds(R_WC1_JX, INPUT_DIM),   pl.ds(0, 2 * HIDDEN_DIM)]
    wc2    = p_ref[pl.ds(R_WC2, 2 * HIDDEN_DIM), pl.ds(0, HIDDEN_DIM)]
    wo1_H  = p_ref[pl.ds(R_WO1_H, HIDDEN_DIM),   pl.ds(0, HIDDEN_DIM)]
    wo1_x  = p_ref[pl.ds(R_WO1_X, INPUT_DIM),    pl.ds(0, HIDDEN_DIM)]
    wo2    = p_ref[pl.ds(R_WO2, HIDDEN_DIM),     pl.ds(0, OUTPUT_DIM)]

    gamma = p_ref[pl.ds(R_BIAS + 0, 1), pl.ds(0, INPUT_DIM)]
    beta  = p_ref[pl.ds(R_BIAS + 1, 1), pl.ds(0, INPUT_DIM)]
    b1    = p_ref[pl.ds(R_BIAS + 2, 1), pl.ds(0, HIDDEN_DIM)]
    b2    = p_ref[pl.ds(R_BIAS + 3, 1), pl.ds(0, HIDDEN_DIM)]
    bc1   = p_ref[pl.ds(R_BIAS + 4, 1), pl.ds(0, 2 * HIDDEN_DIM)]
    bc2   = p_ref[pl.ds(R_BIAS + 5, 1), pl.ds(0, HIDDEN_DIM)]
    bo1   = p_ref[pl.ds(R_BIAS + 6, 1), pl.ds(0, HIDDEN_DIM)]
    bo2   = p_ref[pl.ds(R_BIAS + 7, 1), pl.ds(0, OUTPUT_DIM)]

    # --- BatchNorm1d, one-pass stats (training mode, biased variance) -------
    inv_n = 1.0 / n_nodes
    s = jnp.sum(x, axis=0, keepdims=True)
    s2 = jnp.sum(x * x, axis=0, keepdims=True)
    mean = s * inv_n
    var = s2 * inv_n - mean * mean
    scale = gamma * jax.lax.rsqrt(var + BN_EPS)
    shift = beta - mean * scale
    xn = x * scale + shift                                  # (N, Din)

    # --- inputnet: Linear -> ReLU -> Linear -> Tanh --------------------------
    h = jnp.dot(xn, w1, preferred_element_type=jnp.float32) + b1
    h = jnp.maximum(h, 0.0)
    h = jnp.dot(h, w2, preferred_element_type=jnp.float32) + b2
    H = jnp.tanh(h)                                         # (N, Dh)

    # --- EdgeConv gather: one stacked [src; dst] one-hot, two feature blocks -
    node_iota = jax.lax.broadcasted_iota(jnp.int32, (1, n_nodes), 1)   # (1, N)
    onehot_sd = (srcdst_ref[...] == node_iota).astype(jnp.float32)     # (2E, N)

    gH = jnp.dot(onehot_sd, H, preferred_element_type=jnp.float32)     # (2E, Dh)
    gx = jnp.dot(onehot_sd, xn, preferred_element_type=jnp.float32)    # (2E, Din)
    x_jH, x_iH = gH[:n_edges], gH[n_edges:]
    x_jx, x_ix = gx[:n_edges], gx[n_edges:]

    # --- EdgeConv message (concat-free via split weights) --------------------
    # m = x_i @ wc1[:F] + (x_j - x_i) @ wc1[F:]  with wc1 pre-split in wrapper
    m = (jnp.dot(x_iH, wc1_iH, preferred_element_type=jnp.float32)
         + jnp.dot(x_ix, wc1_ix, preferred_element_type=jnp.float32)
         + jnp.dot(x_jH, wc1_jH, preferred_element_type=jnp.float32)
         + jnp.dot(x_jx, wc1_jx, preferred_element_type=jnp.float32)
         + bc1)
    m = jnp.maximum(m, 0.0)
    m = jnp.dot(m, wc2, preferred_element_type=jnp.float32) + bc2
    m = jnp.tanh(m)                                         # (E, Dh)

    # --- scatter-add to destination nodes (transposed one-hot built directly)
    dst_row = idx_ref[pl.ds(0, 1), pl.ds(0, n_edges)]                  # (1, E)
    node_iota_col = jax.lax.broadcasted_iota(jnp.int32, (n_nodes, 1), 0)
    onehot_dst_T = (node_iota_col == dst_row).astype(jnp.float32)      # (N, E)
    H2 = jnp.dot(onehot_dst_T, m, preferred_element_type=jnp.float32)  # (N, Dh)

    # --- global_mean_pool (concat-free: pool H2 and xn separately) -----------
    batch_row = idx_ref[pl.ds(0, 1), pl.ds(n_edges, n_nodes)]          # (1, N)
    graph_iota = jax.lax.broadcasted_iota(jnp.int32, (n_graphs, 1), 0)
    onehot_b = (graph_iota == batch_row).astype(jnp.float32)           # (B, N)
    counts = jnp.sum(onehot_b, axis=1, keepdims=True)                  # (B, 1)
    inv_counts = pl.reciprocal(counts, approx=False)
    pooled_H2 = jnp.dot(onehot_b, H2, preferred_element_type=jnp.float32) * inv_counts
    pooled_x = jnp.dot(onehot_b, xn, preferred_element_type=jnp.float32) * inv_counts

    # --- outputnet: Linear -> ReLU -> Linear -> Sigmoid (split wo1) ----------
    o = (jnp.dot(pooled_H2, wo1_H, preferred_element_type=jnp.float32)
         + jnp.dot(pooled_x, wo1_x, preferred_element_type=jnp.float32)
         + bo1)
    o = jnp.maximum(o, 0.0)
    o = jnp.dot(o, wo2, preferred_element_type=jnp.float32) + bo2
    out_ref[...] = jax.nn.sigmoid(o)


def pack_params(params):
    """Pack all 16 tiny parameter arrays into one (296, 64) f32 slab."""
    (gamma, beta, w1, b1, w2, b2, wc1, bc1, wc2, bc2, wo1, bo1, wo2, bo2) = params
    Dh, Din = HIDDEN_DIM, INPUT_DIM
    # wc1 row-blocks: [x_i:H | x_i:xn | (x_j-x_i):H | (x_j-x_i):xn]
    A = wc1[0:Dh]
    B = wc1[Dh:Dh + Din]
    C = wc1[Dh + Din:2 * Dh + Din]
    D = wc1[2 * Dh + Din:]
    slab = jnp.zeros((SLAB_ROWS, SLAB_COLS), jnp.float32)

    def put(s, r, a):
        return s.at[r:r + a.shape[0], 0:a.shape[1]].set(a)

    slab = put(slab, R_W1, w1)
    slab = put(slab, R_W2, w2)
    slab = put(slab, R_WC1_IH, A - C)
    slab = put(slab, R_WC1_IX, B - D)
    slab = put(slab, R_WC1_JH, C)
    slab = put(slab, R_WC1_JX, D)
    slab = put(slab, R_WC2, wc2)
    slab = put(slab, R_WO1_H, wo1[:Dh])
    slab = put(slab, R_WO1_X, wo1[Dh:])
    slab = put(slab, R_WO2, wo2)
    for i, b in enumerate((gamma, beta, b1, b2, bc1, bc2, bo1, bo2)):
        slab = put(slab, R_BIAS + i, b)
    return slab


def edgenet_forward(x, edge_index, batch, params):
    """x: (N, Din) f32; edge_index: (2, E) i32; batch: (N,) i32."""
    src = edge_index[0].astype(jnp.int32)
    dst = edge_index[1].astype(jnp.int32)

    # stacked [src; dst] column for the single (2E, N) gather one-hot
    srcdst = jnp.concatenate([src, dst]).reshape(2 * N_EDGES, 1)
    # packed row-vector indices: dst (scatter one-hot) then batch (pool one-hot)
    idx_rows = jnp.concatenate([dst, batch.astype(jnp.int32)]).reshape(1, N_EDGES + N_NODES)
    pslab = pack_params(params)

    F1 = HIDDEN_DIM + INPUT_DIM
    flops = 2 * (
        N_NODES * INPUT_DIM * HIDDEN_DIM
        + N_NODES * HIDDEN_DIM * HIDDEN_DIM
        + 2 * N_EDGES * N_NODES * F1                 # stacked gather (H + xn)
        + N_EDGES * 2 * F1 * 2 * HIDDEN_DIM          # convnn layer 1 (split)
        + N_EDGES * 2 * HIDDEN_DIM * HIDDEN_DIM      # convnn layer 2
        + N_NODES * N_EDGES * HIDDEN_DIM             # scatter-add
        + N_GRAPHS * N_NODES * F1                    # mean-pool
        + N_GRAPHS * F1 * HIDDEN_DIM
        + N_GRAPHS * HIDDEN_DIM * OUTPUT_DIM)
    transcendentals = (N_NODES + N_EDGES) * HIDDEN_DIM + N_GRAPHS + INPUT_DIM
    bytes_accessed = 4 * (x.size + srcdst.size + idx_rows.size + pslab.size
                          + N_GRAPHS * OUTPUT_DIM)

    vmem = pl.BlockSpec(memory_space=pltpu.MemorySpace.VMEM)
    inputs = (x, srcdst, idx_rows, pslab)

    return pl.pallas_call(
        edgenet_kernel,
        out_shape=jax.ShapeDtypeStruct((N_GRAPHS, OUTPUT_DIM), jnp.float32),
        in_specs=[vmem] * len(inputs),
        out_specs=vmem,
        cost_estimate=pl.CostEstimate(flops=int(flops),
                                      transcendentals=int(transcendentals),
                                      bytes_accessed=int(bytes_accessed)),
    )(*inputs)


def edgenet_reference(x, edge_index, batch, params):
    """Pure-JAX reference mirroring the PyTorch forward semantics."""
    (gamma, beta, w1, b1, w2, b2, wc1, bc1, wc2, bc2, wo1, bo1, wo2, bo2) = params
    mean = x.mean(0, keepdims=True)
    var = ((x - mean) ** 2).mean(0, keepdims=True)
    xn = (x - mean) / jnp.sqrt(var + BN_EPS) * gamma + beta
    h = jnp.maximum(xn @ w1 + b1, 0.0)
    H = jnp.tanh(h @ w2 + b2)
    feat = jnp.concatenate([H, xn], -1)
    src, dst = edge_index[0], edge_index[1]
    x_i = feat[dst]
    x_j = feat[src]
    m = jnp.concatenate([x_i, x_j - x_i], -1)
    m = jnp.maximum(m @ wc1 + bc1, 0.0)
    m = jnp.tanh(m @ wc2 + bc2)
    H2 = jnp.zeros((x.shape[0], HIDDEN_DIM), jnp.float32).at[dst].add(m)
    feat2 = jnp.concatenate([H2, xn], -1)
    sums = jnp.zeros((N_GRAPHS, feat2.shape[1]), jnp.float32).at[batch].add(feat2)
    counts = jnp.zeros((N_GRAPHS,), jnp.float32).at[batch].add(1.0)
    pooled = sums / counts[:, None]
    o = jnp.maximum(pooled @ wo1 + bo1, 0.0)
    return jax.nn.sigmoid(o @ wo2 + bo2)


def init_params(key):
    ks = jax.random.split(key, 16)

    def lin(kw, din, dout, scale):
        w = jax.random.normal(kw, (din, dout), jnp.float32) * scale
        b = jnp.zeros((1, dout), jnp.float32)
        return w, b

    gamma = jnp.ones((1, INPUT_DIM), jnp.float32)
    beta = jnp.zeros((1, INPUT_DIM), jnp.float32)
    w1, b1 = lin(ks[0], INPUT_DIM, HIDDEN_DIM, 0.2)
    w2, b2 = lin(ks[1], HIDDEN_DIM, HIDDEN_DIM, 0.2)
    F2 = 2 * (HIDDEN_DIM + INPUT_DIM)
    wc1, bc1 = lin(ks[2], F2, 2 * HIDDEN_DIM, 0.1)
    wc2, bc2 = lin(ks[3], 2 * HIDDEN_DIM, HIDDEN_DIM, 0.1)
    F1 = HIDDEN_DIM + INPUT_DIM
    wo1, bo1 = lin(ks[4], F1, HIDDEN_DIM, 0.2)
    wo2, bo2 = lin(ks[5], HIDDEN_DIM, OUTPUT_DIM, 0.2)
    return (gamma, beta, w1, b1, w2, b2, wc1, bc1, wc2, bc2, wo1, bo1, wo2, bo2)


if __name__ == "__main__":
    key = jax.random.PRNGKey(0)
    k_x, k_e0, k_e1, k_p = jax.random.split(key, 4)

    x = jax.random.normal(k_x, (N_NODES, INPUT_DIM), jnp.float32)

    # batch: first half of nodes -> graph 0, second half -> graph 1
    half = N_NODES // 2
    batch = jnp.concatenate([jnp.zeros((half,), jnp.int32),
                             jnp.ones((N_NODES - half,), jnp.int32)])

    # edges within each graph
    e_half = N_EDGES // 2
    src = jnp.concatenate([
        jax.random.randint(jax.random.fold_in(k_e0, 0), (e_half,), 0, half),
        half + jax.random.randint(jax.random.fold_in(k_e0, 1), (e_half,), 0, half)])
    dst = jnp.concatenate([
        jax.random.randint(jax.random.fold_in(k_e1, 0), (e_half,), 0, half),
        half + jax.random.randint(jax.random.fold_in(k_e1, 1), (e_half,), 0, half)])
    edge_index = jnp.stack([src, dst]).astype(jnp.int32)   # (2, E)

    params = init_params(k_p)

    out = edgenet_forward(x, edge_index, batch, params)
    out = jax.block_until_ready(out)

    ref = edgenet_reference(x, edge_index, batch, params)
    assert out.shape == (N_GRAPHS, OUTPUT_DIM)
    assert jnp.allclose(out, ref, atol=1e-3, rtol=1e-3), (out, ref)

    print("KERNEL_OK")
</pallas_src>

<mosaic_0001>
module attributes {stable_mosaic.version = 11 : i64} {
  func.func @edgenet_kernel(%arg0: memref<64x13xf32, #tpu.memory_space<vmem>>, %arg1: memref<256x1xi32, #tpu.memory_space<vmem>>, %arg2: memref<1x192xi32, #tpu.memory_space<vmem>>, %arg3: memref<296x64xf32, #tpu.memory_space<vmem>>, %arg4: memref<2x1xf32, #tpu.memory_space<vmem>>) attributes {dimension_semantics = [], scalar_prefetch = 0 : i64, scratch_operands = 0 : i64, tpu.core_type = #tpu.core_type<tc>} {
    %c0 = arith.constant 0 : index
    %c0_0 = arith.constant 0 : index
    %0 = vector.load %arg0[%c0, %c0_0] : memref<64x13xf32, #tpu.memory_space<vmem>>, vector<64x13xf32>
    %c0_1 = arith.constant 0 : index
    %c0_2 = arith.constant 0 : index
    %1 = vector.load %arg3[%c0_1, %c0_2] : memref<296x64xf32, #tpu.memory_space<vmem>>, vector<13x32xf32>
    %c16 = arith.constant 16 : index
    %c0_3 = arith.constant 0 : index
    %2 = vector.load %arg3[%c16, %c0_3] : memref<296x64xf32, #tpu.memory_space<vmem>>, vector<32x32xf32>
    %c48 = arith.constant 48 : index
    %c0_4 = arith.constant 0 : index
    %3 = vector.load %arg3[%c48, %c0_4] : memref<296x64xf32, #tpu.memory_space<vmem>>, vector<32x64xf32>
    %c80 = arith.constant 80 : index
    %c0_5 = arith.constant 0 : index
    %4 = vector.load %arg3[%c80, %c0_5] : memref<296x64xf32, #tpu.memory_space<vmem>>, vector<13x64xf32>
    %c96 = arith.constant 96 : index
    %c0_6 = arith.constant 0 : index
    %5 = vector.load %arg3[%c96, %c0_6] : memref<296x64xf32, #tpu.memory_space<vmem>>, vector<32x64xf32>
    %c128 = arith.constant 128 : index
    %c0_7 = arith.constant 0 : index
    %6 = vector.load %arg3[%c128, %c0_7] : memref<296x64xf32, #tpu.memory_space<vmem>>, vector<13x64xf32>
    %c144 = arith.constant 144 : index
    %c0_8 = arith.constant 0 : index
    %7 = vector.load %arg3[%c144, %c0_8] : memref<296x64xf32, #tpu.memory_space<vmem>>, vector<64x32xf32>
    %c208 = arith.constant 208 : index
    %c0_9 = arith.constant 0 : index
    %8 = vector.load %arg3[%c208, %c0_9] : memref<296x64xf32, #tpu.memory_space<vmem>>, vector<32x32xf32>
    %c240 = arith.constant 240 : index
    %c0_10 = arith.constant 0 : index
    %9 = vector.load %arg3[%c240, %c0_10] : memref<296x64xf32, #tpu.memory_space<vmem>>, vector<13x32xf32>
    %c256 = arith.constant 256 : index
    %c0_11 = arith.constant 0 : index
    %10 = vector.load %arg3[%c256, %c0_11] : memref<296x64xf32, #tpu.memory_space<vmem>>, vector<32x1xf32>
    %c288 = arith.constant 288 : index
    %c0_12 = arith.constant 0 : index
    %11 = vector.load %arg3[%c288, %c0_12] : memref<296x64xf32, #tpu.memory_space<vmem>>, vector<1x13xf32>
    %c289 = arith.constant 289 : index
    %c0_13 = arith.constant 0 : index
    %12 = vector.load %arg3[%c289, %c0_13] : memref<296x64xf32, #tpu.memory_space<vmem>>, vector<1x13xf32>
    %c290 = arith.constant 290 : index
    %c0_14 = arith.constant 0 : index
    %13 = vector.load %arg3[%c290, %c0_14] : memref<296x64xf32, #tpu.memory_space<vmem>>, vector<1x32xf32>
    %c291 = arith.constant 291 : index
    %c0_15 = arith.constant 0 : index
    %14 = vector.load %arg3[%c291, %c0_15] : memref<296x64xf32, #tpu.memory_space<vmem>>, vector<1x32xf32>
    %c292 = arith.constant 292 : index
    %c0_16 = arith.constant 0 : index
    %15 = vector.load %arg3[%c292, %c0_16] : memref<296x64xf32, #tpu.memory_space<vmem>>, vector<1x64xf32>
    %c293 = arith.constant 293 : index
    %c0_17 = arith.constant 0 : index
    %16 = vector.load %arg3[%c293, %c0_17] : memref<296x64xf32, #tpu.memory_space<vmem>>, vector<1x32xf32>
    %c294 = arith.constant 294 : index
    %c0_18 = arith.constant 0 : index
    %17 = vector.load %arg3[%c294, %c0_18] : memref<296x64xf32, #tpu.memory_space<vmem>>, vector<1x32xf32>
    %c295 = arith.constant 295 : index
    %c0_19 = arith.constant 0 : index
    %18 = vector.load %arg3[%c295, %c0_19] : memref<296x64xf32, #tpu.memory_space<vmem>>, vector<1x1xf32>
    %cst = arith.constant dense<0.000000e+00> : vector<13xf32>
    %19 = vector.multi_reduction <add>, %0, %cst [0] : vector<64x13xf32> to vector<13xf32>
    %20 = vector.shape_cast %19 : vector<13xf32> to vector<1x13xf32>
    %21 = arith.mulf %0, %0 : vector<64x13xf32>
    %cst_20 = arith.constant dense<0.000000e+00> : vector<13xf32>
    %22 = vector.multi_reduction <add>, %21, %cst_20 [0] : vector<64x13xf32> to vector<13xf32>
    %23 = vector.shape_cast %22 : vector<13xf32> to vector<1x13xf32>
    %cst_21 = arith.constant 1.562500e-02 : f32
    %24 = vector.broadcast %cst_21 : f32 to vector<1x13xf32>
    %25 = arith.mulf %20, %24 : vector<1x13xf32>
    %cst_22 = arith.constant 1.562500e-02 : f32
    %26 = vector.broadcast %cst_22 : f32 to vector<1x13xf32>
    %27 = arith.mulf %23, %26 : vector<1x13xf32>
    %28 = arith.mulf %25, %25 : vector<1x13xf32>
    %29 = arith.subf %27, %28 : vector<1x13xf32>
    %cst_23 = arith.constant 9.99999974E-6 : f32
    %30 = vector.broadcast %cst_23 : f32 to vector<1x13xf32>
    %31 = arith.addf %29, %30 : vector<1x13xf32>
    %32 = math.rsqrt %31 : vector<1x13xf32>
    %33 = arith.mulf %11, %32 : vector<1x13xf32>
    %34 = arith.mulf %25, %33 : vector<1x13xf32>
    %35 = arith.subf %12, %34 : vector<1x13xf32>
    %36 = vector.broadcast %33 : vector<1x13xf32> to vector<64x13xf32>
    %37 = arith.mulf %0, %36 : vector<64x13xf32>
    %38 = vector.broadcast %35 : vector<1x13xf32> to vector<64x13xf32>
    %39 = arith.addf %37, %38 : vector<64x13xf32>
    %cst_24 = arith.constant dense<0.000000e+00> : vector<64x32xf32>
    %40 = tpu.matmul %39, %1, %cst_24 {dimension_numbers = #tpu.dot_dimension_numbers<[1], [0], [0], [1], [0, 0, 1, 1], [], []>} : vector<64x13xf32>, vector<13x32xf32>, vector<64x32xf32> -> vector<64x32xf32>
    %41 = vector.broadcast %13 : vector<1x32xf32> to vector<64x32xf32>
    %42 = arith.addf %40, %41 : vector<64x32xf32>
    %cst_25 = arith.constant 0.000000e+00 : f32
    %43 = vector.broadcast %cst_25 : f32 to vector<64x32xf32>
    %44 = arith.maximumf %42, %43 : vector<64x32xf32>
    %cst_26 = arith.constant dense<0.000000e+00> : vector<64x32xf32>
    %45 = tpu.matmul %44, %2, %cst_26 {dimension_numbers = #tpu.dot_dimension_numbers<[1], [0], [0], [1], [0, 0, 1, 1], [], []>} : vector<64x32xf32>, vector<32x32xf32>, vector<64x32xf32> -> vector<64x32xf32>
    %46 = vector.broadcast %14 : vector<1x32xf32> to vector<64x32xf32>
    %47 = arith.addf %45, %46 : vector<64x32xf32>
    %48 = math.tanh %47 : vector<64x32xf32>
    %49 = tpu.iota {dimensions = array<i32: 1>} : vector<1x64xi32>
    %c0_27 = arith.constant 0 : index
    %c0_28 = arith.constant 0 : index
    %50 = vector.load %arg1[%c0_27, %c0_28] : memref<256x1xi32, #tpu.memory_space<vmem>>, vector<256x1xi32>
    %51 = vector.broadcast %50 : vector<256x1xi32> to vector<256x64xi32>
    %52 = vector.broadcast %49 : vector<1x64xi32> to vector<256x64xi32>
    %53 = arith.cmpi eq, %51, %52 : vector<256x64xi32>
    %54 = arith.extui %53 : vector<256x64xi1> to vector<256x64xi32>
    %55 = arith.sitofp %54 : vector<256x64xi32> to vector<256x64xf32>
    %cst_29 = arith.constant dense<0.000000e+00> : vector<256x32xf32>
    %56 = tpu.matmul %55, %48, %cst_29 {dimension_numbers = #tpu.dot_dimension_numbers<[1], [0], [0], [1], [0, 0, 1, 1], [], []>} : vector<256x64xf32>, vector<64x32xf32>, vector<256x32xf32> -> vector<256x32xf32>
    %cst_30 = arith.constant dense<0.000000e+00> : vector<256x13xf32>
    %57 = tpu.matmul %55, %39, %cst_30 {dimension_numbers = #tpu.dot_dimension_numbers<[1], [0], [0], [1], [0, 0, 1, 1], [], []>} : vector<256x64xf32>, vector<64x13xf32>, vector<256x13xf32> -> vector<256x13xf32>
    %58 = vector.extract_strided_slice %56 {offsets = [0, 0], sizes = [128, 32], strides = [1, 1]} : vector<256x32xf32> to vector<128x32xf32>
    %59 = vector.extract_strided_slice %56 {offsets = [128, 0], sizes = [128, 32], strides = [1, 1]} : vector<256x32xf32> to vector<128x32xf32>
    %60 = vector.extract_strided_slice %57 {offsets = [0, 0], sizes = [128, 13], strides = [1, 1]} : vector<256x13xf32> to vector<128x13xf32>
    %61 = vector.extract_strided_slice %57 {offsets = [128, 0], sizes = [128, 13], strides = [1, 1]} : vector<256x13xf32> to vector<128x13xf32>
    %cst_31 = arith.constant dense<0.000000e+00> : vector<128x64xf32>
    %62 = tpu.matmul %59, %3, %cst_31 {dimension_numbers = #tpu.dot_dimension_numbers<[1], [0], [0], [1], [0, 0, 1, 1], [], []>} : vector<128x32xf32>, vector<32x64xf32>, vector<128x64xf32> -> vector<128x64xf32>
    %cst_32 = arith.constant dense<0.000000e+00> : vector<128x64xf32>
    %63 = tpu.matmul %61, %4, %cst_32 {dimension_numbers = #tpu.dot_dimension_numbers<[1], [0], [0], [1], [0, 0, 1, 1], [], []>} : vector<128x13xf32>, vector<13x64xf32>, vector<128x64xf32> -> vector<128x64xf32>
    %64 = arith.addf %62, %63 : vector<128x64xf32>
    %cst_33 = arith.constant dense<0.000000e+00> : vector<128x64xf32>
    %65 = tpu.matmul %58, %5, %cst_33 {dimension_numbers = #tpu.dot_dimension_numbers<[1], [0], [0], [1], [0, 0, 1, 1], [], []>} : vector<128x32xf32>, vector<32x64xf32>, vector<128x64xf32> -> vector<128x64xf32>
    %66 = arith.addf %64, %65 : vector<128x64xf32>
    %cst_34 = arith.constant dense<0.000000e+00> : vector<128x64xf32>
    %67 = tpu.matmul %60, %6, %cst_34 {dimension_numbers = #tpu.dot_dimension_numbers<[1], [0], [0], [1], [0, 0, 1, 1], [], []>} : vector<128x13xf32>, vector<13x64xf32>, vector<128x64xf32> -> vector<128x64xf32>
    %68 = arith.addf %66, %67 : vector<128x64xf32>
    %69 = vector.broadcast %15 : vector<1x64xf32> to vector<128x64xf32>
    %70 = arith.addf %68, %69 : vector<128x64xf32>
    %cst_35 = arith.constant 0.000000e+00 : f32
    %71 = vector.broadcast %cst_35 : f32 to vector<128x64xf32>
    %72 = arith.maximumf %70, %71 : vector<128x64xf32>
    %cst_36 = arith.constant dense<0.000000e+00> : vector<128x32xf32>
    %73 = tpu.matmul %72, %7, %cst_36 {dimension_numbers = #tpu.dot_dimension_numbers<[1], [0], [0], [1], [0, 0, 1, 1], [], []>} : vector<128x64xf32>, vector<64x32xf32>, vector<128x32xf32> -> vector<128x32xf32>
    %74 = vector.broadcast %16 : vector<1x32xf32> to vector<128x32xf32>
    %75 = arith.addf %73, %74 : vector<128x32xf32>
    %76 = math.tanh %75 : vector<128x32xf32>
    %c0_37 = arith.constant 0 : index
    %c0_38 = arith.constant 0 : index
    %77 = vector.load %arg2[%c0_37, %c0_38] : memref<1x192xi32, #tpu.memory_space<vmem>>, vector<1x128xi32>
    %78 = tpu.iota {dimensions = array<i32: 0>} : vector<64x1xi32>
    %79 = vector.broadcast %78 : vector<64x1xi32> to vector<64x128xi32>
    %80 = vector.broadcast %77 : vector<1x128xi32> to vector<64x128xi32>
    %81 = arith.cmpi eq, %79, %80 : vector<64x128xi32>
    %82 = arith.extui %81 : vector<64x128xi1> to vector<64x128xi32>
    %83 = arith.sitofp %82 : vector<64x128xi32> to vector<64x128xf32>
    %cst_39 = arith.constant dense<0.000000e+00> : vector<64x32xf32>
    %84 = tpu.matmul %83, %76, %cst_39 {dimension_numbers = #tpu.dot_dimension_numbers<[1], [0], [0], [1], [0, 0, 1, 1], [], []>} : vector<64x128xf32>, vector<128x32xf32>, vector<64x32xf32> -> vector<64x32xf32>
    %c0_40 = arith.constant 0 : index
    %c128_41 = arith.constant 128 : index
    %85 = vector.load %arg2[%c0_40, %c128_41] : memref<1x192xi32, #tpu.memory_space<vmem>>, vector<1x64xi32>
    %86 = tpu.iota {dimensions = array<i32: 0>} : vector<2x1xi32>
    %87 = vector.broadcast %86 : vector<2x1xi32> to vector<2x64xi32>
    %88 = vector.broadcast %85 : vector<1x64xi32> to vector<2x64xi32>
    %89 = arith.cmpi eq, %87, %88 : vector<2x64xi32>
    %90 = arith.extui %89 : vector<2x64xi1> to vector<2x64xi32>
    %91 = arith.sitofp %90 : vector<2x64xi32> to vector<2x64xf32>
    %cst_42 = arith.constant dense<0.000000e+00> : vector<2xf32>
    %92 = vector.multi_reduction <add>, %91, %cst_42 [1] : vector<2x64xf32> to vector<2xf32>
    %93 = vector.shape_cast %92 : vector<2xf32> to vector<2x1xf32>
    %94 = tpu.reciprocal %93 : vector<2x1xf32> -> vector<2x1xf32>
    %cst_43 = arith.constant dense<0.000000e+00> : vector<2x32xf32>
    %95 = tpu.matmul %91, %84, %cst_43 {dimension_numbers = #tpu.dot_dimension_numbers<[1], [0], [0], [1], [0, 0, 1, 1], [], []>} : vector<2x64xf32>, vector<64x32xf32>, vector<2x32xf32> -> vector<2x32xf32>
    %96 = vector.broadcast %94 : vector<2x1xf32> to vector<2x32xf32>
    %97 = arith.mulf %95, %96 : vector<2x32xf32>
    %cst_44 = arith.constant dense<0.000000e+00> : vector<2x13xf32>
    %98 = tpu.matmul %91, %39, %cst_44 {dimension_numbers = #tpu.dot_dimension_numbers<[1], [0], [0], [1], [0, 0, 1, 1], [], []>} : vector<2x64xf32>, vector<64x13xf32>, vector<2x13xf32> -> vector<2x13xf32>
    %99 = vector.broadcast %94 : vector<2x1xf32> to vector<2x13xf32>
    %100 = arith.mulf %98, %99 : vector<2x13xf32>
    %cst_45 = arith.constant dense<0.000000e+00> : vector<2x32xf32>
    %101 = tpu.matmul %97, %8, %cst_45 {dimension_numbers = #tpu.dot_dimension_numbers<[1], [0], [0], [1], [0, 0, 1, 1], [], []>} : vector<2x32xf32>, vector<32x32xf32>, vector<2x32xf32> -> vector<2x32xf32>
    %cst_46 = arith.constant dense<0.000000e+00> : vector<2x32xf32>
    %102 = tpu.matmul %100, %9, %cst_46 {dimension_numbers = #tpu.dot_dimension_numbers<[1], [0], [0], [1], [0, 0, 1, 1], [], []>} : vector<2x13xf32>, vector<13x32xf32>, vector<2x32xf32> -> vector<2x32xf32>
    %103 = arith.addf %101, %102 : vector<2x32xf32>
    %104 = vector.broadcast %17 : vector<1x32xf32> to vector<2x32xf32>
    %105 = arith.addf %103, %104 : vector<2x32xf32>
    %cst_47 = arith.constant 0.000000e+00 : f32
    %106 = vector.broadcast %cst_47 : f32 to vector<2x32xf32>
    %107 = arith.maximumf %105, %106 : vector<2x32xf32>
    %cst_48 = arith.constant dense<0.000000e+00> : vector<2x1xf32>
    %108 = tpu.matmul %107, %10, %cst_48 {dimension_numbers = #tpu.dot_dimension_numbers<[1], [0], [0], [1], [0, 0, 1, 1], [], []>} : vector<2x32xf32>, vector<32x1xf32>, vector<2x1xf32> -> vector<2x1xf32>
    %109 = vector.broadcast %18 : vector<1x1xf32> to vector<2x1xf32>
    %110 = arith.addf %108, %109 : vector<2x1xf32>
    %111 = arith.negf %110 : vector<2x1xf32>
    %112 = math.exp %111 : vector<2x1xf32>
    %cst_49 = arith.constant 1.000000e+00 : f32
    %113 = vector.broadcast %cst_49 : f32 to vector<2x1xf32>
    %114 = arith.addf %113, %112 : vector<2x1xf32>
    %115 = arith.divf %113, %114 : vector<2x1xf32>
    %c0_50 = arith.constant 0 : index
    %c0_51 = arith.constant 0 : index
    %116 = vector.load %arg4[%c0_50, %c0_51] : memref<2x1xf32, #tpu.memory_space<vmem>>, vector<2x1xf32>
    tpu.vector_store %arg4[%c0_50, %c0_51], %115 {strides = array<i32>} : memref<2x1xf32, #tpu.memory_space<vmem>>, vector<2x1xf32>,
    return
  }
}

</mosaic_0001>

<llo_original>
// kernel: tpu_custom_call.1
$region0: #{tpu_custom_call.1}
  #allocation0 [shape = 'u32[]', space=smem, size = 0x4, offset = 0x4, fixed_abs, tag = 'smem constant byte address 0x4 - core index']
  #allocation1 [shape = 'u32[144,128]{1,0:T(1,128)}', space=vmem, size = 0x12000, scoped, tag = 'internal scratch']
  %s0 = inlined_call_operand.vmem [shape: f32[64,13], index: 0, kind: input, shape index: {}]
  %s1 = inlined_call_operand.vmem [shape: s32[256,1], index: 1, kind: input, shape index: {}]
  %s2 = inlined_call_operand.vmem [shape: s32[1,192], index: 2, kind: input, shape index: {}]
  %s3 = inlined_call_operand.vmem [shape: f32[296,64], index: 3, kind: input, shape index: {}]
  %s4 = inlined_call_operand.vmem [shape: f32[2,1], index: 4, kind: output, shape index: {}]
  %s5 = sld [smem:[#allocation0]]
  $region26: #{tpu_custom_call.1} parent=0
    _
  %s7 = ssub.s32 1, %s5
  %s8 = scalar_select 0, %s7, %s5
  // Predicated region
  $region2: #{tpu_custom_call.1} parent=0 // pred_check
    _
  $region3: #{tpu_custom_call.1} parent=0 // pred_check_branch
    %10 = sbr.rel (0) target = $region5
  $region4: #{tpu_custom_call.1} parent=0 // pred_region
    _
  $region5: #{tpu_custom_call.1} parent=0 // pred_fallthru
    _
  // Predicated region
  $region6: #{tpu_custom_call.1} parent=0 // pred_check
    _
  $region7: #{tpu_custom_call.1} parent=0 // pred_check_branch
    %12 = sbr.rel (0) target = $region9
  $region8: #{tpu_custom_call.1} parent=0 // pred_region
    _
  $region9: #{tpu_custom_call.1} parent=0 // pred_fallthru
    _
  // Predicated region
  $region10: #{tpu_custom_call.1} parent=0 // pred_check
    _
  $region11: #{tpu_custom_call.1} parent=0 // pred_check_branch
    %14 = sbr.rel (0) target = $region13
  $region12: #{tpu_custom_call.1} parent=0 // pred_region
    _
  $region13: #{tpu_custom_call.1} parent=0 // pred_fallthru
    _
  // Predicated region
  $region14: #{tpu_custom_call.1} parent=0 // pred_check
    _
  $region15: #{tpu_custom_call.1} parent=0 // pred_check_branch
    %16 = sbr.rel (0) target = $region17
  $region16: #{tpu_custom_call.1} parent=0 // pred_region
    _
  $region17: #{tpu_custom_call.1} parent=0 // pred_fallthru
    _
  %v17 = vld [vmem:[%s0] sm:$0xff]
  %v18 = vld [vmem:[%s0 + $0x8] sm:$0xff]
  %v19 = vld [vmem:[%s0 + $0x10] sm:$0xff]
  %v20 = vld [vmem:[%s0 + $0x18] sm:$0xff]
  %v21 = vld [vmem:[%s0 + $0x20] sm:$0xff]
  %v22 = vld [vmem:[%s0 + $0x28] sm:$0xff]
  %v23 = vld [vmem:[%s0 + $0x30] sm:$0xff]
  %v24 = vld [vmem:[%s0 + $0x38] sm:$0xff]
  %v25 = vld [vmem:[%s3] sm:$0xff]
  %v26 = vld [vmem:[%s3 + $0x8] sm:$0x1f]
  %v27 = vld [vmem:[%s3 + $0x10] sm:$0xff]
  %v28 = vld [vmem:[%s3 + $0x18] sm:$0xff]
  %v29 = vld [vmem:[%s3 + $0x20] sm:$0xff]
  %v30 = vld [vmem:[%s3 + $0x28] sm:$0xff]
  %v31 = vld [vmem:[%s3 + $0x30] sm:$0xff]
  %v32 = vld [vmem:[%s3 + $0x38] sm:$0xff]
  %v33 = vld [vmem:[%s3 + $0x40] sm:$0xff]
  %v34 = vld [vmem:[%s3 + $0x48] sm:$0xff]
  %v35 = vld [vmem:[%s3 + $0x50] sm:$0xff]
  %v36 = vld [vmem:[%s3 + $0x58] sm:$0x1f]
  %v37 = vld [vmem:[%s3 + $0x60] sm:$0xff]
  %v38 = vld [vmem:[%s3 + $0x68] sm:$0xff]
  %v39 = vld [vmem:[%s3 + $0x70] sm:$0xff]
  %v40 = vld [vmem:[%s3 + $0x78] sm:$0xff]
  %v41 = vld [vmem:[%s3 + $0x80] sm:$0xff]
  %v42 = vld [vmem:[%s3 + $0x88] sm:$0x1f]
  %v43 = vld [vmem:[%s3 + $0x90] sm:$0xff]
  %v44 = vld [vmem:[%s3 + $0x98] sm:$0xff]
  %v45 = vld [vmem:[%s3 + $0xa0] sm:$0xff]
  %v46 = vld [vmem:[%s3 + $0xa8] sm:$0xff]
  %v47 = vld [vmem:[%s3 + $0xb0] sm:$0xff]
  %v48 = vld [vmem:[%s3 + $0xb8] sm:$0xff]
  %v49 = vld [vmem:[%s3 + $0xc0] sm:$0xff]
  %v50 = vld [vmem:[%s3 + $0xc8] sm:$0xff]
  %v51 = vld [vmem:[%s3 + $0xd0] sm:$0xff]
  %v52 = vld [vmem:[%s3 + $0xd8] sm:$0xff]
  %v53 = vld [vmem:[%s3 + $0xe0] sm:$0xff]
  %v54 = vld [vmem:[%s3 + $0xe8] sm:$0xff]
  %v55 = vld [vmem:[%s3 + $0xf0] sm:$0xff]
  %v56 = vld [vmem:[%s3 + $0xf8] sm:$0x1f]
  %v57 = vld [vmem:[%s3 + $0x100] sm:$0xff]
  %v58 = vld [vmem:[%s3 + $0x108] sm:$0xff]
  %v59 = vld [vmem:[%s3 + $0x110] sm:$0xff]
  %v60 = vld [vmem:[%s3 + $0x118] sm:$0xff]
  %v61 = vld [vmem:[%s3 + $0x120] sm:$0x1]
  %v62 = vld [vmem:[%s3 + $0x121] sm:$0x1]
  %v63 = vld [vmem:[%s3 + $0x122] sm:$0x1]
  %v64 = vld [vmem:[%s3 + $0x123] sm:$0x1]
  %v65 = vld [vmem:[%s3 + $0x124] sm:$0x1]
  %v66 = vld [vmem:[%s3 + $0x125] sm:$0x1]
  %v67 = vld [vmem:[%s3 + $0x126] sm:$0x1]
  %v68 = vld [vmem:[%s3 + $0x127] sm:$0x1]
  %vm69 = vcmask 105472
  %v70 = vsel %vm69, %v17, 0.0
  %v71 = vsel %vm69, %v18, 0.0
  %v72 = vadd.f32 %v70, %v71
  %v73 = vsel %vm69, %v19, 0.0
  %v74 = vadd.f32 %v72, %v73
  %v75 = vsel %vm69, %v20, 0.0
  %v76 = vadd.f32 %v74, %v75
  %v77 = vsel %vm69, %v21, 0.0
  %v78 = vadd.f32 %v76, %v77
  %v79 = vsel %vm69, %v22, 0.0
  %v80 = vadd.f32 %v78, %v79
  %v81 = vsel %vm69, %v23, 0.0
  %v82 = vadd.f32 %v80, %v81
  %v83 = vsel %vm69, %v24, 0.0
  %v84 = vadd.f32 %v82, %v83
  %v85 = vrot.slane %v84, 4
  %v86 = vadd.f32 %v84, %v85
  %v87 = vrot.slane %v86, 2
  %v88 = vadd.f32 %v86, %v87
  %v89 = vrot.slane %v88, 1
  %v90 = vadd.f32 %v88, %v89
  %v91 = vmul.f32 %v17, %v17
  %v92 = vmul.f32 %v18, %v18
  %v93 = vmul.f32 %v19, %v19
  %v94 = vmul.f32 %v20, %v20
  %v95 = vmul.f32 %v21, %v21
  %v96 = vmul.f32 %v22, %v22
  %v97 = vmul.f32 %v23, %v23
  %v98 = vmul.f32 %v24, %v24
  %v99 = vsel %vm69, %v91, 0.0
  %v100 = vsel %vm69, %v92, 0.0
  %v101 = vadd.f32 %v99, %v100
  %v102 = vsel %vm69, %v93, 0.0
  %v103 = vadd.f32 %v101, %v102
  %v104 = vsel %vm69, %v94, 0.0
  %v105 = vadd.f32 %v103, %v104
  %v106 = vsel %vm69, %v95, 0.0
  %v107 = vadd.f32 %v105, %v106
  %v108 = vsel %vm69, %v96, 0.0
  %v109 = vadd.f32 %v107, %v108
  %v110 = vsel %vm69, %v97, 0.0
  %v111 = vadd.f32 %v109, %v110
  %v112 = vsel %vm69, %v98, 0.0
  %v113 = vadd.f32 %v111, %v112
  %v114 = vrot.slane %v113, 4
  %v115 = vadd.f32 %v113, %v114
  %v116 = vrot.slane %v115, 2
  %v117 = vadd.f32 %v115, %v116
  %v118 = vrot.slane %v117, 1
  %v119 = vadd.f32 %v117, %v118
  %v120 = vmul.f32 %v90, 0.015625
  %v121 = vmul.f32 %v119, 0.015625
  %v122 = vmul.f32 %v120, %v120
  %v123 = vsub.f32 %v121, %v122
  %v124 = vadd.f32 %v123, 1e-05
  %v125 = vrsqrt.pop %v124
  %v126 = vmul.f32 %v61, %v125
  %v127 = vmul.f32 %v120, %v126
  %v128 = vsub.f32 %v62, %v127
  %v129 = vlaneseq
  %v130 = vshrl.u32 %v129, 7
  %v131 = vsub.s32 0, %v130
  %v132 = vrot.slane %v126, %v131
  %v133 = vmul.f32 %v17, %v132
  %v134 = vmul.f32 %v18, %v132
  %v135 = vmul.f32 %v19, %v132
  %v136 = vmul.f32 %v20, %v132
  %v137 = vmul.f32 %v21, %v132
  %v138 = vmul.f32 %v22, %v132
  %v139 = vmul.f32 %v23, %v132
  %v140 = vmul.f32 %v24, %v132
  %v141 = vlaneseq
  %v142 = vshrl.u32 %v141, 7
  %v143 = vsub.s32 0, %v142
  %v144 = vrot.slane %v128, %v143
  %v145 = vadd.f32 %v133, %v144
  %v146 = vadd.f32 %v134, %v144
  %v147 = vadd.f32 %v135, %v144
  %v148 = vadd.f32 %v136, %v144
  %v149 = vadd.f32 %v137, %v144
  %v150 = vadd.f32 %v138, %v144
  %v151 = vadd.f32 %v139, %v144
  %v152 = vadd.f32 %v140, %v144
  %v153 = vlaneseq
  %v154 = vshrl.u32 %v153, 7
  %v155 = vsub.s32 0, %v154
  %v156 = vrot.slane %v63, %v155
  %v158 = vsel %vm69, %v145, 0
  %v161 = vsel %vm69, %v146, 0
  %v164 = vsel %vm69, %v147, 0
  %v167 = vsel %vm69, %v148, 0
  %v170 = vsel %vm69, %v149, 0
  %v173 = vsel %vm69, %v150, 0
  %v176 = vsel %vm69, %v151, 0
  %v179 = vsel %vm69, %v152, 0
  %vm181 = vcmask 1044480
  %v183 = vsel %vm181, %v26, 0
  %185 = vmatprep.subr.mxu0 0.0
  %186 = vmatpush1.msra.mxu0 %v25
  %187 = vmatprep.subr.mxu0 0.0
  %188 = vmatpush1.msra.mxu0 %v183
  %189 = vmatprep.subr.mxu0 0.0
  %190 = vmatpush1.msra.mxu0 0.0
  %191 = vmatprep.subr.mxu0 0.0
  %192 = vmatpush1.msra.mxu0 0.0
  %193 = vmatprep.subr.mxu0 0.0
  %194 = vmatpush1.msra.mxu0 0.0
  %195 = vmatprep.subr.mxu0 0.0
  %196 = vmatpush1.msra.mxu0 0.0
  %197 = vmatprep.subr.mxu0 0.0
  %198 = vmatpush1.msra.mxu0 0.0
  %199 = vmatprep.subr.mxu0 0.0
  %200 = vmatpush1.msra.mxu0 0.0
  %201 = vmatprep.subr.mxu0 0.0
  %202 = vmatpush1.msra.mxu0 0.0
  %203 = vmatprep.subr.mxu0 0.0
  %204 = vmatpush1.msra.mxu0 0.0
  %205 = vmatprep.subr.mxu0 0.0
  %206 = vmatpush1.msra.mxu0 0.0
  %207 = vmatprep.subr.mxu0 0.0
  %208 = vmatpush1.msra.mxu0 0.0
  %209 = vmatprep.subr.mxu0 0.0
  %210 = vmatpush1.msra.mxu0 0.0
  %211 = vmatprep.subr.mxu0 0.0
  %212 = vmatpush1.msra.mxu0 0.0
  %213 = vmatprep.subr.mxu0 0.0
  %214 = vmatpush1.msra.mxu0 0.0
  %215 = vmatprep.subr.mxu0 0.0
  %216 = vmatpush1.msra.mxu0 0.0
  %217 = vmatprep.subr.mxu0 0.0
  %218 = vmatpush1.msra.mxu0 0.0
  %219 = vmatprep.subr.mxu0 0.0
  %220 = vmatpush1.msra.mxu0 0.0
  %221 = vmatprep.subr.mxu0 0.0
  %222 = vmatpush1.msra.mxu0 0.0
  %223 = vmatprep.subr.mxu0 0.0
  %224 = vmatpush1.msra.mxu0 0.0
  %225 = vmatprep.subr.mxu0 0.0
  %226 = vmatpush1.msra.mxu0 0.0
  %227 = vmatprep.subr.mxu0 0.0
  %228 = vmatpush1.msra.mxu0 0.0
  %229 = vmatprep.subr.mxu0 0.0
  %230 = vmatpush1.msra.mxu0 0.0
  %231 = vmatprep.subr.mxu0 0.0
  %232 = vmatpush1.msra.mxu0 0.0
  %233 = vmatprep.subr.mxu0 0.0
  %234 = vmatpush1.msra.mxu0 0.0
  %235 = vmatprep.subr.mxu0 0.0
  %236 = vmatpush1.msra.mxu0 0.0
  %237 = vmatprep.subr.mxu0 0.0
  %238 = vmatpush1.msra.mxu0 0.0
  %239 = vmatprep.subr.mxu0 0.0
  %240 = vmatpush1.msra.mxu0 0.0
  %241 = vmatprep.subr.mxu0 0.0
  %242 = vmatpush1.msra.mxu0 0.0
  %243 = vmatprep.subr.mxu0 0.0
  %244 = vmatpush1.msra.mxu0 0.0
  %245 = vmatprep.subr.mxu0 0.0
  %246 = vmatpush1.msra.mxu0 0.0
  %247 = vmatprep.subr.mxu0 0.0
  %248 = vmatpush1.msra.mxu0 0.0
  %249 = vmatprep.mubr.f32.mxu0 0.0
  %250 = vmatmul.mubr.f32.gmra.mrb[0].mxu0 %v158
  %v251 = vpop.f32.mrb[0].mxu0
  %v252 = vadd.f32 %v156, %v251
  %v253 = vpop.f32.mrb[0].mxu0
  %254 = vmatprep.mubr.f32.mxu0 0.0
  %255 = vmatmul.mubr.f32.gmra.mrb[0].mxu0 %v161
  %v256 = vpop.f32.mrb[0].mxu0
  %v257 = vadd.f32 %v156, %v256
  %v258 = vpop.f32.mrb[0].mxu0
  %259 = vmatprep.mubr.f32.mxu0 0.0
  %260 = vmatmul.mubr.f32.gmra.mrb[0].mxu0 %v164
  %v261 = vpop.f32.mrb[0].mxu0
  %v262 = vadd.f32 %v156, %v261
  %v263 = vpop.f32.mrb[0].mxu0
  %264 = vmatprep.mubr.f32.mxu0 0.0
  %265 = vmatmul.mubr.f32.gmra.mrb[0].mxu0 %v167
  %v266 = vpop.f32.mrb[0].mxu0
  %v267 = vadd.f32 %v156, %v266
  %v268 = vpop.f32.mrb[0].mxu0
  %269 = vmatprep.mubr.f32.mxu0 0.0
  %270 = vmatmul.mubr.f32.gmra.mrb[0].mxu0 %v170
  %v271 = vpop.f32.mrb[0].mxu0
  %v272 = vadd.f32 %v156, %v271
  %v273 = vpop.f32.mrb[0].mxu0
  %274 = vmatprep.mubr.f32.mxu0 0.0
  %275 = vmatmul.mubr.f32.gmra.mrb[0].mxu0 %v173
  %v276 = vpop.f32.mrb[0].mxu0
  %v277 = vadd.f32 %v156, %v276
  %v278 = vpop.f32.mrb[0].mxu0
  %279 = vmatprep.mubr.f32.mxu0 0.0
  %280 = vmatmul.mubr.f32.gmra.mrb[0].mxu0 %v176
  %v281 = vpop.f32.mrb[0].mxu0
  %v282 = vadd.f32 %v156, %v281
  %v283 = vpop.f32.mrb[0].mxu0
  %284 = vmatprep.mubr.f32.mxu0 0.0
  %285 = vmatmul.mubr.f32.gmra.mrb[0].mxu0 %v179
  %v286 = vpop.f32.mrb[0].mxu0
  %v287 = vadd.f32 %v156, %v286
  %v288 = vpop.f32.mrb[0].mxu0
  %289 = vdwg.mxu0
  %v290 = vmax.f32 %v252, 0.0
  %v291 = vmax.f32 %v257, 0.0
  %v292 = vmax.f32 %v262, 0.0
  %v293 = vmax.f32 %v267, 0.0
  %v294 = vmax.f32 %v272, 0.0
  %v295 = vmax.f32 %v277, 0.0
  %v296 = vmax.f32 %v282, 0.0
  %v297 = vmax.f32 %v287, 0.0
  %v298 = vlaneseq
  %v299 = vshrl.u32 %v298, 7
  %v300 = vsub.s32 0, %v299
  %v301 = vrot.slane %v64, %v300
  %vm302 = vcmask 261120
  %v304 = vsel %vm302, %v290, 0
  %v307 = vsel %vm302, %v291, 0
  %v310 = vsel %vm302, %v292, 0
  %v313 = vsel %vm302, %v293, 0
  %v316 = vsel %vm302, %v294, 0
  %v319 = vsel %vm302, %v295, 0
  %v322 = vsel %vm302, %v296, 0
  %v325 = vsel %vm302, %v297, 0
  %327 = vmatprep.subr.mxu0 0.0
  %328 = vmatpush1.msra.mxu0 %v27
  %329 = vmatprep.subr.mxu0 0.0
  %330 = vmatpush1.msra.mxu0 %v28
  %331 = vmatprep.subr.mxu0 0.0
  %332 = vmatpush1.msra.mxu0 %v29
  %333 = vmatprep.subr.mxu0 0.0
  %334 = vmatpush1.msra.mxu0 %v30
  %335 = vmatprep.subr.mxu0 0.0
  %336 = vmatpush1.msra.mxu0 0.0
  %337 = vmatprep.subr.mxu0 0.0
  %338 = vmatpush1.msra.mxu0 0.0
  %339 = vmatprep.subr.mxu0 0.0
  %340 = vmatpush1.msra.mxu0 0.0
  %341 = vmatprep.subr.mxu0 0.0
  %342 = vmatpush1.msra.mxu0 0.0
  %343 = vmatprep.subr.mxu0 0.0
  %344 = vmatpush1.msra.mxu0 0.0
  %345 = vmatprep.subr.mxu0 0.0
  %346 = vmatpush1.msra.mxu0 0.0
  %347 = vmatprep.subr.mxu0 0.0
  %348 = vmatpush1.msra.mxu0 0.0
  %349 = vmatprep.subr.mxu0 0.0
  %350 = vmatpush1.msra.mxu0 0.0
  %351 = vmatprep.subr.mxu0 0.0
  %352 = vmatpush1.msra.mxu0 0.0
  %353 = vmatprep.subr.mxu0 0.0
  %354 = vmatpush1.msra.mxu0 0.0
  %355 = vmatprep.subr.mxu0 0.0
  %356 = vmatpush1.msra.mxu0 0.0
  %357 = vmatprep.subr.mxu0 0.0
  %358 = vmatpush1.msra.mxu0 0.0
  %359 = vmatprep.subr.mxu0 0.0
  %360 = vmatpush1.msra.mxu0 0.0
  %361 = vmatprep.subr.mxu0 0.0
  %362 = vmatpush1.msra.mxu0 0.0
  %363 = vmatprep.subr.mxu0 0.0
  %364 = vmatpush1.msra.mxu0 0.0
  %365 = vmatprep.subr.mxu0 0.0
  %366 = vmatpush1.msra.mxu0 0.0
  %367 = vmatprep.subr.mxu0 0.0
  %368 = vmatpush1.msra.mxu0 0.0
  %369 = vmatprep.subr.mxu0 0.0
  %370 = vmatpush1.msra.mxu0 0.0
  %371 = vmatprep.subr.mxu0 0.0
  %372 = vmatpush1.msra.mxu0 0.0
  %373 = vmatprep.subr.mxu0 0.0
  %374 = vmatpush1.msra.mxu0 0.0
  %375 = vmatprep.subr.mxu0 0.0
  %376 = vmatpush1.msra.mxu0 0.0
  %377 = vmatprep.subr.mxu0 0.0
  %378 = vmatpush1.msra.mxu0 0.0
  %379 = vmatprep.subr.mxu0 0.0
  %380 = vmatpush1.msra.mxu0 0.0
  %381 = vmatprep.subr.mxu0 0.0
  %382 = vmatpush1.msra.mxu0 0.0
  %383 = vmatprep.subr.mxu0 0.0
  %384 = vmatpush1.msra.mxu0 0.0
  %385 = vmatprep.subr.mxu0 0.0
  %386 = vmatpush1.msra.mxu0 0.0
  %387 = vmatprep.subr.mxu0 0.0
  %388 = vmatpush1.msra.mxu0 0.0
  %389 = vmatprep.subr.mxu0 0.0
  %390 = vmatpush1.msra.mxu0 0.0
  %391 = vmatprep.mubr.f32.mxu0 0.0
  %392 = vmatmul.mubr.f32.gmra.mrb[0].mxu0 %v304
  %v393 = vpop.f32.mrb[0].mxu0
  %v394 = vadd.f32 %v301, %v393
  %v395 = vpop.f32.mrb[0].mxu0
  %396 = vmatprep.mubr.f32.mxu0 0.0
  %397 = vmatmul.mubr.f32.gmra.mrb[0].mxu0 %v307
  %v398 = vpop.f32.mrb[0].mxu0
  %v399 = vadd.f32 %v301, %v398
  %v400 = vpop.f32.mrb[0].mxu0
  %401 = vmatprep.mubr.f32.mxu0 0.0
  %402 = vmatmul.mubr.f32.gmra.mrb[0].mxu0 %v310
  %v403 = vpop.f32.mrb[0].mxu0
  %v404 = vadd.f32 %v301, %v403
  %v405 = vpop.f32.mrb[0].mxu0
  %406 = vmatprep.mubr.f32.mxu0 0.0
  %407 = vmatmul.mubr.f32.gmra.mrb[0].mxu0 %v313
  %v408 = vpop.f32.mrb[0].mxu0
  %v409 = vadd.f32 %v301, %v408
  %v410 = vpop.f32.mrb[0].mxu0
  %411 = vmatprep.mubr.f32.mxu0 0.0
  %412 = vmatmul.mubr.f32.gmra.mrb[0].mxu0 %v316
  %v413 = vpop.f32.mrb[0].mxu0
  %v414 = vadd.f32 %v301, %v413
  %v415 = vpop.f32.mrb[0].mxu0
  %416 = vmatprep.mubr.f32.mxu0 0.0
  %417 = vmatmul.mubr.f32.gmra.mrb[0].mxu0 %v319
  %v418 = vpop.f32.mrb[0].mxu0
  %v419 = vadd.f32 %v301, %v418
  %v420 = vpop.f32.mrb[0].mxu0
  %421 = vmatprep.mubr.f32.mxu0 0.0
  %422 = vmatmul.mubr.f32.gmra.mrb[0].mxu0 %v322
  %v423 = vpop.f32.mrb[0].mxu0
  %v424 = vadd.f32 %v301, %v423
  %v425 = vpop.f32.mrb[0].mxu0
  %426 = vmatprep.mubr.f32.mxu0 0.0
  %427 = vmatmul.mubr.f32.gmra.mrb[0].mxu0 %v325
  %v428 = vpop.f32.mrb[0].mxu0
  %v429 = vadd.f32 %v301, %v428
  %v430 = vpop.f32.mrb[0].mxu0
  %431 = vdwg.mxu0
  %v432 = vtanh.pop %v394
  %v433 = vtanh.pop %v399
  %v434 = vtanh.pop %v404
  %v435 = vtanh.pop %v409
  %v436 = vtanh.pop %v414
  %v437 = vtanh.pop %v419
  %v438 = vtanh.pop %v424
  %v439 = vtanh.pop %v429
  %v440 = vlaneseq
  %v441 = vand.u32 %v440, 127
  %v442 = vld [vmem:[%s1] sm:$0xff]
  %v443 = vld [vmem:[%s1 + $0x8] sm:$0xff]
  %v444 = vld [vmem:[%s1 + $0x10] sm:$0xff]
  %v445 = vld [vmem:[%s1 + $0x18] sm:$0xff]
  %v446 = vld [vmem:[%s1 + $0x20] sm:$0xff]
  %v447 = vld [vmem:[%s1 + $0x28] sm:$0xff]
  %v448 = vld [vmem:[%s1 + $0x30] sm:$0xff]
  %v449 = vld [vmem:[%s1 + $0x38] sm:$0xff]
  %v450 = vld [vmem:[%s1 + $0x40] sm:$0xff]
  %v451 = vld [vmem:[%s1 + $0x48] sm:$0xff]
  %v452 = vld [vmem:[%s1 + $0x50] sm:$0xff]
  %v453 = vld [vmem:[%s1 + $0x58] sm:$0xff]
  %v454 = vld [vmem:[%s1 + $0x60] sm:$0xff]
  %v455 = vld [vmem:[%s1 + $0x68] sm:$0xff]
  %v456 = vld [vmem:[%s1 + $0x70] sm:$0xff]
  %v457 = vld [vmem:[%s1 + $0x78] sm:$0xff]
  %v458 = vld [vmem:[%s1 + $0x80] sm:$0xff]
  %v459 = vld [vmem:[%s1 + $0x88] sm:$0xff]
  %v460 = vld [vmem:[%s1 + $0x90] sm:$0xff]
  %v461 = vld [vmem:[%s1 + $0x98] sm:$0xff]
  %v462 = vld [vmem:[%s1 + $0xa0] sm:$0xff]
  %v463 = vld [vmem:[%s1 + $0xa8] sm:$0xff]
  %v464 = vld [vmem:[%s1 + $0xb0] sm:$0xff]
  %v465 = vld [vmem:[%s1 + $0xb8] sm:$0xff]
  %v466 = vld [vmem:[%s1 + $0xc0] sm:$0xff]
  %v467 = vld [vmem:[%s1 + $0xc8] sm:$0xff]
  %v468 = vld [vmem:[%s1 + $0xd0] sm:$0xff]
  %v469 = vld [vmem:[%s1 + $0xd8] sm:$0xff]
  %v470 = vld [vmem:[%s1 + $0xe0] sm:$0xff]
  %v471 = vld [vmem:[%s1 + $0xe8] sm:$0xff]
  %v472 = vld [vmem:[%s1 + $0xf0] sm:$0xff]
  %v473 = vld [vmem:[%s1 + $0xf8] sm:$0xff]
  %474 = vset.pattern.permute.xlu0 0
  %475 = vperm.xlu0 %474, %v442
  %v476 = vpop.permute.xlu0 %475
  %477 = vset.pattern.permute.xlu0 0
  %478 = vperm.xlu0 %477, %v443
  %v479 = vpop.permute.xlu0 %478
  %480 = vset.pattern.permute.xlu0 0
  %481 = vperm.xlu0 %480, %v444
  %v482 = vpop.permute.xlu0 %481
  %483 = vset.pattern.permute.xlu0 0
  %484 = vperm.xlu0 %483, %v445
  %v485 = vpop.permute.xlu0 %484
  %486 = vset.pattern.permute.xlu0 0
  %487 = vperm.xlu0 %486, %v446
  %v488 = vpop.permute.xlu0 %487
  %489 = vset.pattern.permute.xlu0 0
  %490 = vperm.xlu0 %489, %v447
  %v491 = vpop.permute.xlu0 %490
  %492 = vset.pattern.permute.xlu0 0
  %493 = vperm.xlu0 %492, %v448
  %v494 = vpop.permute.xlu0 %493
  %495 = vset.pattern.permute.xlu0 0
  %496 = vperm.xlu0 %495, %v449
  %v497 = vpop.permute.xlu0 %496
  %498 = vset.pattern.permute.xlu0 0
  %499 = vperm.xlu0 %498, %v450
  %v500 = vpop.permute.xlu0 %499
  %501 = vset.pattern.permute.xlu0 0
  %502 = vperm.xlu0 %501, %v451
  %v503 = vpop.permute.xlu0 %502
  %504 = vset.pattern.permute.xlu0 0
  %505 = vperm.xlu0 %504, %v452
  %v506 = vpop.permute.xlu0 %505
  %507 = vset.pattern.permute.xlu0 0
  %508 = vperm.xlu0 %507, %v453
  %v509 = vpop.permute.xlu0 %508
  %510 = vset.pattern.permute.xlu0 0
  %511 = vperm.xlu0 %510, %v454
  %v512 = vpop.permute.xlu0 %511
  %513 = vset.pattern.permute.xlu0 0
  %514 = vperm.xlu0 %513, %v455
  %v515 = vpop.permute.xlu0 %514
  %516 = vset.pattern.permute.xlu0 0
  %517 = vperm.xlu0 %516, %v456
  %v518 = vpop.permute.xlu0 %517
  %519 = vset.pattern.permute.xlu0 0
  %520 = vperm.xlu0 %519, %v457
  %v521 = vpop.permute.xlu0 %520
  %522 = vset.pattern.permute.xlu0 0
  %523 = vperm.xlu0 %522, %v458
  %v524 = vpop.permute.xlu0 %523
  %525 = vset.pattern.permute.xlu0 0
  %526 = vperm.xlu0 %525, %v459
  %v527 = vpop.permute.xlu0 %526
  %528 = vset.pattern.permute.xlu0 0
  %529 = vperm.xlu0 %528, %v460
  %v530 = vpop.permute.xlu0 %529
  %531 = vset.pattern.permute.xlu0 0
  %532 = vperm.xlu0 %531, %v461
  %v533 = vpop.permute.xlu0 %532
  %534 = vset.pattern.permute.xlu0 0
  %535 = vperm.xlu0 %534, %v462
  %v536 = vpop.permute.xlu0 %535
  %537 = vset.pattern.permute.xlu0 0
  %538 = vperm.xlu0 %537, %v463
  %v539 = vpop.permute.xlu0 %538
  %540 = vset.pattern.permute.xlu0 0
  %541 = vperm.xlu0 %540, %v464
  %v542 = vpop.permute.xlu0 %541
  %543 = vset.pattern.permute.xlu0 0
  %544 = vperm.xlu0 %543, %v465
  %v545 = vpop.permute.xlu0 %544
  %546 = vset.pattern.permute.xlu0 0
  %547 = vperm.xlu0 %546, %v466
  %v548 = vpop.permute.xlu0 %547
  %549 = vset.pattern.permute.xlu0 0
  %550 = vperm.xlu0 %549, %v467
  %v551 = vpop.permute.xlu0 %550
  %552 = vset.pattern.permute.xlu0 0
  %553 = vperm.xlu0 %552, %v468
  %v554 = vpop.permute.xlu0 %553
  %555 = vset.pattern.permute.xlu0 0
  %556 = vperm.xlu0 %555, %v469
  %v557 = vpop.permute.xlu0 %556
  %558 = vset.pattern.permute.xlu0 0
  %559 = vperm.xlu0 %558, %v470
  %v560 = vpop.permute.xlu0 %559
  %561 = vset.pattern.permute.xlu0 0
  %562 = vperm.xlu0 %561, %v471
  %v563 = vpop.permute.xlu0 %562
  %564 = vset.pattern.permute.xlu0 0
  %565 = vperm.xlu0 %564, %v472
  %v566 = vpop.permute.xlu0 %565
  %567 = vset.pattern.permute.xlu0 0
  %568 = vperm.xlu0 %567, %v473
  %v569 = vpop.permute.xlu0 %568
  %vm570 = vcmp.eq.s32.totalorder %v476, %v441
  %vm571 = vcmp.eq.s32.totalorder %v479, %v441
  %vm572 = vcmp.eq.s32.totalorder %v482, %v441
  %vm573 = vcmp.eq.s32.totalorder %v485, %v441
  %vm574 = vcmp.eq.s32.totalorder %v488, %v441
  %vm575 = vcmp.eq.s32.totalorder %v491, %v441
  %vm576 = vcmp.eq.s32.totalorder %v494, %v441
  %vm577 = vcmp.eq.s32.totalorder %v497, %v441
  %vm578 = vcmp.eq.s32.totalorder %v500, %v441
  %vm579 = vcmp.eq.s32.totalorder %v503, %v441
  %vm580 = vcmp.eq.s32.totalorder %v506, %v441
  %vm581 = vcmp.eq.s32.totalorder %v509, %v441
  %vm582 = vcmp.eq.s32.totalorder %v512, %v441
  %vm583 = vcmp.eq.s32.totalorder %v515, %v441
  %vm584 = vcmp.eq.s32.totalorder %v518, %v441
  %vm585 = vcmp.eq.s32.totalorder %v521, %v441
  %vm586 = vcmp.eq.s32.totalorder %v524, %v441
  %vm587 = vcmp.eq.s32.totalorder %v527, %v441
  %vm588 = vcmp.eq.s32.totalorder %v530, %v441
  %vm589 = vcmp.eq.s32.totalorder %v533, %v441
  %vm590 = vcmp.eq.s32.totalorder %v536, %v441
  %vm591 = vcmp.eq.s32.totalorder %v539, %v441
  %vm592 = vcmp.eq.s32.totalorder %v542, %v441
  %vm593 = vcmp.eq.s32.totalorder %v545, %v441
  %vm594 = vcmp.eq.s32.totalorder %v548, %v441
  %vm595 = vcmp.eq.s32.totalorder %v551, %v441
  %vm596 = vcmp.eq.s32.totalorder %v554, %v441
  %vm597 = vcmp.eq.s32.totalorder %v557, %v441
  %vm598 = vcmp.eq.s32.totalorder %v560, %v441
  %vm599 = vcmp.eq.s32.totalorder %v563, %v441
  %vm600 = vcmp.eq.s32.totalorder %v566, %v441
  %vm601 = vcmp.eq.s32.totalorder %v569, %v441
  %v602 = vsel %vm570, 1, 0
  %v603 = vsel %vm571, 1, 0
  %v604 = vsel %vm572, 1, 0
  %v605 = vsel %vm573, 1, 0
  %v606 = vsel %vm574, 1, 0
  %v607 = vsel %vm575, 1, 0
  %v608 = vsel %vm576, 1, 0
  %v609 = vsel %vm577, 1, 0
  %v610 = vsel %vm578, 1, 0
  %v611 = vsel %vm579, 1, 0
  %v612 = vsel %vm580, 1, 0
  %v613 = vsel %vm581, 1, 0
  %v614 = vsel %vm582, 1, 0
  %v615 = vsel %vm583, 1, 0
  %v616 = vsel %vm584, 1, 0
  %v617 = vsel %vm585, 1, 0
  %v618 = vsel %vm586, 1, 0
  %v619 = vsel %vm587, 1, 0
  %v620 = vsel %vm588, 1, 0
  %v621 = vsel %vm589, 1, 0
  %v622 = vsel %vm590, 1, 0
  %v623 = vsel %vm591, 1, 0
  %v624 = vsel %vm592, 1, 0
  %v625 = vsel %vm593, 1, 0
  %v626 = vsel %vm594, 1, 0
  %v627 = vsel %vm595, 1, 0
  %v628 = vsel %vm596, 1, 0
  %v629 = vsel %vm597, 1, 0
  %v630 = vsel %vm598, 1, 0
  %v631 = vsel %vm599, 1, 0
  %v632 = vsel %vm600, 1, 0
  %v633 = vsel %vm601, 1, 0
  %v634 = vcvt.s32.f32 %v602
  %v635 = vcvt.s32.f32 %v603
  %v636 = vcvt.s32.f32 %v604
  %v637 = vcvt.s32.f32 %v605
  %v638 = vcvt.s32.f32 %v606
  %v639 = vcvt.s32.f32 %v607
  %v640 = vcvt.s32.f32 %v608
  %v641 = vcvt.s32.f32 %v609
  %v642 = vcvt.s32.f32 %v610
  %v643 = vcvt.s32.f32 %v611
  %v644 = vcvt.s32.f32 %v612
  %v645 = vcvt.s32.f32 %v613
  %v646 = vcvt.s32.f32 %v614
  %v647 = vcvt.s32.f32 %v615
  %v648 = vcvt.s32.f32 %v616
  %v649 = vcvt.s32.f32 %v617
  %v650 = vcvt.s32.f32 %v618
  %v651 = vcvt.s32.f32 %v619
  %v652 = vcvt.s32.f32 %v620
  %v653 = vcvt.s32.f32 %v621
  %v654 = vcvt.s32.f32 %v622
  %v655 = vcvt.s32.f32 %v623
  %v656 = vcvt.s32.f32 %v624
  %v657 = vcvt.s32.f32 %v625
  %v658 = vcvt.s32.f32 %v626
  %v659 = vcvt.s32.f32 %v627
  %v660 = vcvt.s32.f32 %v628
  %v661 = vcvt.s32.f32 %v629
  %v662 = vcvt.s32.f32 %v630
  %v663 = vcvt.s32.f32 %v631
  %v664 = vcvt.s32.f32 %v632
  %v665 = vcvt.s32.f32 %v633
  %vm666 = vcmask 523264
  %v668 = vsel %vm666, %v634, 0
  %v671 = vsel %vm666, %v635, 0
  %v674 = vsel %vm666, %v636, 0
  %v677 = vsel %vm666, %v637, 0
  %v680 = vsel %vm666, %v638, 0
  %v683 = vsel %vm666, %v639, 0
  %v686 = vsel %vm666, %v640, 0
  %v689 = vsel %vm666, %v641, 0
  %v692 = vsel %vm666, %v642, 0
  %v695 = vsel %vm666, %v643, 0
  %v698 = vsel %vm666, %v644, 0
  %v701 = vsel %vm666, %v645, 0
  %v704 = vsel %vm666, %v646, 0
  %v707 = vsel %vm666, %v647, 0
  %v710 = vsel %vm666, %v648, 0
  %v713 = vsel %vm666, %v649, 0
  %v716 = vsel %vm666, %v650, 0
  %v719 = vsel %vm666, %v651, 0
  %v722 = vsel %vm666, %v652, 0
  %v725 = vsel %vm666, %v653, 0
  %v728 = vsel %vm666, %v654, 0
  %v731 = vsel %vm666, %v655, 0
  %v734 = vsel %vm666, %v656, 0
  %v737 = vsel %vm666, %v657, 0
  %v740 = vsel %vm666, %v658, 0
  %v743 = vsel %vm666, %v659, 0
  %v746 = vsel %vm666, %v660, 0
  %v749 = vsel %vm666, %v661, 0
  %v752 = vsel %vm666, %v662, 0
  %v755 = vsel %vm666, %v663, 0
  %v758 = vsel %vm666, %v664, 0
  %v761 = vsel %vm666, %v665, 0
  %763 = vmatprep.subr.mxu0 0.0
  %764 = vmatpush1.msra.mxu0 %v432
  %765 = vmatprep.subr.mxu0 0.0
  %766 = vmatpush1.msra.mxu0 %v433
  %767 = vmatprep.subr.mxu0 0.0
  %768 = vmatpush1.msra.mxu0 %v434
  %769 = vmatprep.subr.mxu0 0.0
  %770 = vmatpush1.msra.mxu0 %v435
  %771 = vmatprep.subr.mxu0 0.0
  %772 = vmatpush1.msra.mxu0 %v436
  %773 = vmatprep.subr.mxu0 0.0
  %774 = vmatpush1.msra.mxu0 %v437
  %775 = vmatprep.subr.mxu0 0.0
  %776 = vmatpush1.msra.mxu0 %v438
  %777 = vmatprep.subr.mxu0 0.0
  %778 = vmatpush1.msra.mxu0 %v439
  %779 = vmatprep.subr.mxu0 0.0
  %780 = vmatpush1.msra.mxu0 0.0
  %781 = vmatprep.subr.mxu0 0.0
  %782 = vmatpush1.msra.mxu0 0.0
  %783 = vmatprep.subr.mxu0 0.0
  %784 = vmatpush1.msra.mxu0 0.0
  %785 = vmatprep.subr.mxu0 0.0
  %786 = vmatpush1.msra.mxu0 0.0
  %787 = vmatprep.subr.mxu0 0.0
  %788 = vmatpush1.msra.mxu0 0.0
  %789 = vmatprep.subr.mxu0 0.0
  %790 = vmatpush1.msra.mxu0 0.0
  %791 = vmatprep.subr.mxu0 0.0
  %792 = vmatpush1.msra.mxu0 0.0
  %793 = vmatprep.subr.mxu0 0.0
  %794 = vmatpush1.msra.mxu0 0.0
  %795 = vmatprep.subr.mxu0 0.0
  %796 = vmatpush1.msra.mxu0 0.0
  %797 = vmatprep.subr.mxu0 0.0
  %798 = vmatpush1.msra.mxu0 0.0
  %799 = vmatprep.subr.mxu0 0.0
  %800 = vmatpush1.msra.mxu0 0.0
  %801 = vmatprep.subr.mxu0 0.0
  %802 = vmatpush1.msra.mxu0 0.0
  %803 = vmatprep.subr.mxu0 0.0
  %804 = vmatpush1.msra.mxu0 0.0
  %805 = vmatprep.subr.mxu0 0.0
  %806 = vmatpush1.msra.mxu0 0.0
  %807 = vmatprep.subr.mxu0 0.0
  %808 = vmatpush1.msra.mxu0 0.0
  %809 = vmatprep.subr.mxu0 0.0
  %810 = vmatpush1.msra.mxu0 0.0
  %811 = vmatprep.subr.mxu0 0.0
  %812 = vmatpush1.msra.mxu0 0.0
  %813 = vmatprep.subr.mxu0 0.0
  %814 = vmatpush1.msra.mxu0 0.0
  %815 = vmatprep.subr.mxu0 0.0
  %816 = vmatpush1.msra.mxu0 0.0
  %817 = vmatprep.subr.mxu0 0.0
  %818 = vmatpush1.msra.mxu0 0.0
  %819 = vmatprep.subr.mxu0 0.0
  %820 = vmatpush1.msra.mxu0 0.0
  %821 = vmatprep.subr.mxu0 0.0
  %822 = vmatpush1.msra.mxu0 0.0
  %823 = vmatprep.subr.mxu0 0.0
  %824 = vmatpush1.msra.mxu0 0.0
  %825 = vmatprep.subr.mxu0 0.0
  %826 = vmatpush1.msra.mxu0 0.0
  %827 = vmatprep.mubr.f32.mxu0 0.0
  %828 = vmatmul.mubr.f32.gmra.mrb[0].mxu0 %v668
  %v829 = vpop.f32.mrb[0].mxu0
  %v830 = vadd.f32 0.0, %v829
  %v831 = vpop.f32.mrb[0].mxu0
  %832 = vmatprep.mubr.f32.mxu0 0.0
  %833 = vmatmul.mubr.f32.gmra.mrb[0].mxu0 %v671
  %v834 = vpop.f32.mrb[0].mxu0
  %v835 = vadd.f32 0.0, %v834
  %v836 = vpop.f32.mrb[0].mxu0
  %837 = vmatprep.mubr.f32.mxu0 0.0
  %838 = vmatmul.mubr.f32.gmra.mrb[0].mxu0 %v674
  %v839 = vpop.f32.mrb[0].mxu0
  %v840 = vadd.f32 0.0, %v839
  %v841 = vpop.f32.mrb[0].mxu0
  %842 = vmatprep.mubr.f32.mxu0 0.0
  %843 = vmatmul.mubr.f32.gmra.mrb[0].mxu0 %v677
  %v844 = vpop.f32.mrb[0].mxu0
  %v845 = vadd.f32 0.0, %v844
  %v846 = vpop.f32.mrb[0].mxu0
  %847 = vmatprep.mubr.f32.mxu0 0.0
  %848 = vmatmul.mubr.f32.gmra.mrb[0].mxu0 %v680
  %v849 = vpop.f32.mrb[0].mxu0
  %v850 = vadd.f32 0.0, %v849
  %v851 = vpop.f32.mrb[0].mxu0
  %852 = vmatprep.mubr.f32.mxu0 0.0
  %853 = vmatmul.mubr.f32.gmra.mrb[0].mxu0 %v683
  %v854 = vpop.f32.mrb[0].mxu0
  %v855 = vadd.f32 0.0, %v854
  %v856 = vpop.f32.mrb[0].mxu0
  %857 = vmatprep.mubr.f32.mxu0 0.0
  %858 = vmatmul.mubr.f32.gmra.mrb[0].mxu0 %v686
  %v859 = vpop.f32.mrb[0].mxu0
  %v860 = vadd.f32 0.0, %v859
  %v861 = vpop.f32.mrb[0].mxu0
  %862 = vmatprep.mubr.f32.mxu0 0.0
  %863 = vmatmul.mubr.f32.gmra.mrb[0].mxu0 %v689
  %v864 = vpop.f32.mrb[0].mxu0
  %v865 = vadd.f32 0.0, %v864
  %v866 = vpop.f32.mrb[0].mxu0
  %867 = vmatprep.mubr.f32.mxu0 0.0
  %868 = vmatmul.mubr.f32.gmra.mrb[0].mxu0 %v692
  %v869 = vpop.f32.mrb[0].mxu0
  %v870 = vadd.f32 0.0, %v869
  %v871 = vpop.f32.mrb[0].mxu0
  %872 = vmatprep.mubr.f32.mxu0 0.0
  %873 = vmatmul.mubr.f32.gmra.mrb[0].mxu0 %v695
  %v874 = vpop.f32.mrb[0].mxu0
  %v875 = vadd.f32 0.0, %v874
  %v876 = vpop.f32.mrb[0].mxu0
  %877 = vmatprep.mubr.f32.mxu0 0.0
  %878 = vmatmul.mubr.f32.gmra.mrb[0].mxu0 %v698
  %v879 = vpop.f32.mrb[0].mxu0
  %v880 = vadd.f32 0.0, %v879
  %v881 = vpop.f32.mrb[0].mxu0
  %882 = vmatprep.mubr.f32.mxu0 0.0
  %883 = vmatmul.mubr.f32.gmra.mrb[0].mxu0 %v701
  %v884 = vpop.f32.mrb[0].mxu0
  %v885 = vadd.f32 0.0, %v884
  %v886 = vpop.f32.mrb[0].mxu0
  %887 = vmatprep.mubr.f32.mxu0 0.0
  %888 = vmatmul.mubr.f32.gmra.mrb[0].mxu0 %v704
  %v889 = vpop.f32.mrb[0].mxu0
  %v890 = vadd.f32 0.0, %v889
  %v891 = vpop.f32.mrb[0].mxu0
  %892 = vmatprep.mubr.f32.mxu0 0.0
  %893 = vmatmul.mubr.f32.gmra.mrb[0].mxu0 %v707
  %v894 = vpop.f32.mrb[0].mxu0
  %v895 = vadd.f32 0.0, %v894
  %v896 = vpop.f32.mrb[0].mxu0
  %897 = vmatprep.mubr.f32.mxu0 0.0
  %898 = vmatmul.mubr.f32.gmra.mrb[0].mxu0 %v710
  %v899 = vpop.f32.mrb[0].mxu0
  %v900 = vadd.f32 0.0, %v899
  %v901 = vpop.f32.mrb[0].mxu0
  %902 = vmatprep.mubr.f32.mxu0 0.0
  %903 = vmatmul.mubr.f32.gmra.mrb[0].mxu0 %v713
  %v904 = vpop.f32.mrb[0].mxu0
  %v905 = vadd.f32 0.0, %v904
  %v906 = vpop.f32.mrb[0].mxu0
  %907 = vmatprep.mubr.f32.mxu0 0.0
  %908 = vmatmul.mubr.f32.gmra.mrb[0].mxu0 %v716
  %v909 = vpop.f32.mrb[0].mxu0
  %v910 = vadd.f32 0.0, %v909
  %v911 = vpop.f32.mrb[0].mxu0
  %912 = vmatprep.mubr.f32.mxu0 0.0
  %913 = vmatmul.mubr.f32.gmra.mrb[0].mxu0 %v719
  %v914 = vpop.f32.mrb[0].mxu0
  %v915 = vadd.f32 0.0, %v914
  %v916 = vpop.f32.mrb[0].mxu0
  %917 = vmatprep.mubr.f32.mxu0 0.0
  %918 = vmatmul.mubr.f32.gmra.mrb[0].mxu0 %v722
  %v919 = vpop.f32.mrb[0].mxu0
  %v920 = vadd.f32 0.0, %v919
  %v921 = vpop.f32.mrb[0].mxu0
  %922 = vmatprep.mubr.f32.mxu0 0.0
  %923 = vmatmul.mubr.f32.gmra.mrb[0].mxu0 %v725
  %v924 = vpop.f32.mrb[0].mxu0
  %v925 = vadd.f32 0.0, %v924
  %v926 = vpop.f32.mrb[0].mxu0
  %927 = vmatprep.mubr.f32.mxu0 0.0
  %928 = vmatmul.mubr.f32.gmra.mrb[0].mxu0 %v728
  %v929 = vpop.f32.mrb[0].mxu0
  %v930 = vadd.f32 0.0, %v929
  %v931 = vpop.f32.mrb[0].mxu0
  %932 = vmatprep.mubr.f32.mxu0 0.0
  %933 = vmatmul.mubr.f32.gmra.mrb[0].mxu0 %v731
  %v934 = vpop.f32.mrb[0].mxu0
  %v935 = vadd.f32 0.0, %v934
  %v936 = vpop.f32.mrb[0].mxu0
  %937 = vmatprep.mubr.f32.mxu0 0.0
  %938 = vmatmul.mubr.f32.gmra.mrb[0].mxu0 %v734
  %v939 = vpop.f32.mrb[0].mxu0
  %v940 = vadd.f32 0.0, %v939
  %v941 = vpop.f32.mrb[0].mxu0
  %942 = vmatprep.mubr.f32.mxu0 0.0
  %943 = vmatmul.mubr.f32.gmra.mrb[0].mxu0 %v737
  %v944 = vpop.f32.mrb[0].mxu0
  %v945 = vadd.f32 0.0, %v944
  %v946 = vpop.f32.mrb[0].mxu0
  %947 = vmatprep.mubr.f32.mxu0 0.0
  %948 = vmatmul.mubr.f32.gmra.mrb[0].mxu0 %v740
  %v949 = vpop.f32.mrb[0].mxu0
  %v950 = vadd.f32 0.0, %v949
  %v951 = vpop.f32.mrb[0].mxu0
  %952 = vmatprep.mubr.f32.mxu0 0.0
  %953 = vmatmul.mubr.f32.gmra.mrb[0].mxu0 %v743
  %v954 = vpop.f32.mrb[0].mxu0
  %v955 = vadd.f32 0.0, %v954
  %v956 = vpop.f32.mrb[0].mxu0
  %957 = vmatprep.mubr.f32.mxu0 0.0
  %958 = vmatmul.mubr.f32.gmra.mrb[0].mxu0 %v746
  %v959 = vpop.f32.mrb[0].mxu0
  %v960 = vadd.f32 0.0, %v959
  %v961 = vpop.f32.mrb[0].mxu0
  %962 = vmatprep.mubr.f32.mxu0 0.0
  %963 = vmatmul.mubr.f32.gmra.mrb[0].mxu0 %v749
  %v964 = vpop.f32.mrb[0].mxu0
  %v965 = vadd.f32 0.0, %v964
  %v966 = vpop.f32.mrb[0].mxu0
  %967 = vmatprep.mubr.f32.mxu0 0.0
  %968 = vmatmul.mubr.f32.gmra.mrb[0].mxu0 %v752
  %v969 = vpop.f32.mrb[0].mxu0
  %v970 = vadd.f32 0.0, %v969
  %v971 = vpop.f32.mrb[0].mxu0
  %972 = vmatprep.mubr.f32.mxu0 0.0
  %973 = vmatmul.mubr.f32.gmra.mrb[0].mxu0 %v755
  %v974 = vpop.f32.mrb[0].mxu0
  %v975 = vadd.f32 0.0, %v974
  %v976 = vpop.f32.mrb[0].mxu0
  %977 = vmatprep.mubr.f32.mxu0 0.0
  %978 = vmatmul.mubr.f32.gmra.mrb[0].mxu0 %v758
  %v979 = vpop.f32.mrb[0].mxu0
  %v980 = vadd.f32 0.0, %v979
  %v981 = vpop.f32.mrb[0].mxu0
  %982 = vmatprep.mubr.f32.mxu0 0.0
  %983 = vmatmul.mubr.f32.gmra.mrb[0].mxu0 %v761
  %v984 = vpop.f32.mrb[0].mxu0
  %v985 = vadd.f32 0.0, %v984
  %v986 = vpop.f32.mrb[0].mxu0
  %987 = vdwg.mxu0
  %988 = vmatprep.subr.mxu0 0.0
  %989 = vmatpush1.msra.mxu0 %v145
  %990 = vmatprep.subr.mxu0 0.0
  %991 = vmatpush1.msra.mxu0 %v146
  %992 = vmatprep.subr.mxu0 0.0
  %993 = vmatpush1.msra.mxu0 %v147
  %994 = vmatprep.subr.mxu0 0.0
  %995 = vmatpush1.msra.mxu0 %v148
  %996 = vmatprep.subr.mxu0 0.0
  %997 = vmatpush1.msra.mxu0 %v149
  %998 = vmatprep.subr.mxu0 0.0
  %999 = vmatpush1.msra.mxu0 %v150
  %1000 = vmatprep.subr.mxu0 0.0
  %1001 = vmatpush1.msra.mxu0 %v151
  %1002 = vmatprep.subr.mxu0 0.0
  %1003 = vmatpush1.msra.mxu0 %v152
  %1004 = vmatprep.subr.mxu0 0.0
  %1005 = vmatpush1.msra.mxu0 0.0
  %1006 = vmatprep.subr.mxu0 0.0
  %1007 = vmatpush1.msra.mxu0 0.0
  %1008 = vmatprep.subr.mxu0 0.0
  %1009 = vmatpush1.msra.mxu0 0.0
  %1010 = vmatprep.subr.mxu0 0.0
  %1011 = vmatpush1.msra.mxu0 0.0
  %1012 = vmatprep.subr.mxu0 0.0
  %1013 = vmatpush1.msra.mxu0 0.0
  %1014 = vmatprep.subr.mxu0 0.0
  %1015 = vmatpush1.msra.mxu0 0.0
  %1016 = vmatprep.subr.mxu0 0.0
  %1017 = vmatpush1.msra.mxu0 0.0
  %1018 = vmatprep.subr.mxu0 0.0
  %1019 = vmatpush1.msra.mxu0 0.0
  %1020 = vmatprep.subr.mxu0 0.0
  %1021 = vmatpush1.msra.mxu0 0.0
  %1022 = vmatprep.subr.mxu0 0.0
  %1023 = vmatpush1.msra.mxu0 0.0
  %1024 = vmatprep.subr.mxu0 0.0
  %1025 = vmatpush1.msra.mxu0 0.0
  %1026 = vmatprep.subr.mxu0 0.0
  %1027 = vmatpush1.msra.mxu0 0.0
  %1028 = vmatprep.subr.mxu0 0.0
  %1029 = vmatpush1.msra.mxu0 0.0
  %1030 = vmatprep.subr.mxu0 0.0
  %1031 = vmatpush1.msra.mxu0 0.0
  %1032 = vmatprep.subr.mxu0 0.0
  %1033 = vmatpush1.msra.mxu0 0.0
  %1034 = vmatprep.subr.mxu0 0.0
  %1035 = vmatpush1.msra.mxu0 0.0
  %1036 = vmatprep.subr.mxu0 0.0
  %1037 = vmatpush1.msra.mxu0 0.0
  %1038 = vmatprep.subr.mxu0 0.0
  %1039 = vmatpush1.msra.mxu0 0.0
  %1040 = vmatprep.subr.mxu0 0.0
  %1041 = vmatpush1.msra.mxu0 0.0
  %1042 = vmatprep.subr.mxu0 0.0
  %1043 = vmatpush1.msra.mxu0 0.0
  %1044 = vmatprep.subr.mxu0 0.0
  %1045 = vmatpush1.msra.mxu0 0.0
  %1046 = vmatprep.subr.mxu0 0.0
  %1047 = vmatpush1.msra.mxu0 0.0
  %1048 = vmatprep.subr.mxu0 0.0
  %1049 = vmatpush1.msra.mxu0 0.0
  %1050 = vmatprep.subr.mxu0 0.0
  %1051 = vmatpush1.msra.mxu0 0.0
  %1052 = vmatprep.mubr.f32.mxu0 0.0
  %1053 = vmatmul.mubr.f32.gmra.mrb[0].mxu0 %v668
  %v1054 = vpop.f32.mrb[0].mxu0
  %v1055 = vadd.f32 0.0, %v1054
  %v1056 = vpop.f32.mrb[0].mxu0
  %1057 = vmatprep.mubr.f32.mxu0 0.0
  %1058 = vmatmul.mubr.f32.gmra.mrb[0].mxu0 %v671
  %v1059 = vpop.f32.mrb[0].mxu0
  %v1060 = vadd.f32 0.0, %v1059
  %v1061 = vpop.f32.mrb[0].mxu0
  %1062 = vmatprep.mubr.f32.mxu0 0.0
  %1063 = vmatmul.mubr.f32.gmra.mrb[0].mxu0 %v674
  %v1064 = vpop.f32.mrb[0].mxu0
  %v1065 = vadd.f32 0.0, %v1064
  %v1066 = vpop.f32.mrb[0].mxu0
  %1067 = vmatprep.mubr.f32.mxu0 0.0
  %1068 = vmatmul.mubr.f32.gmra.mrb[0].mxu0 %v677
  %v1069 = vpop.f32.mrb[0].mxu0
  %v1070 = vadd.f32 0.0, %v1069
  %v1071 = vpop.f32.mrb[0].mxu0
  %1072 = vmatprep.mubr.f32.mxu0 0.0
  %1073 = vmatmul.mubr.f32.gmra.mrb[0].mxu0 %v680
  %v1074 = vpop.f32.mrb[0].mxu0
  %v1075 = vadd.f32 0.0, %v1074
  %v1076 = vpop.f32.mrb[0].mxu0
  %1077 = vmatprep.mubr.f32.mxu0 0.0
  %1078 = vmatmul.mubr.f32.gmra.mrb[0].mxu0 %v683
  %v1079 = vpop.f32.mrb[0].mxu0
  %v1080 = vadd.f32 0.0, %v1079
  %v1081 = vpop.f32.mrb[0].mxu0
  %1082 = vmatprep.mubr.f32.mxu0 0.0
  %1083 = vmatmul.mubr.f32.gmra.mrb[0].mxu0 %v686
  %v1084 = vpop.f32.mrb[0].mxu0
  %v1085 = vadd.f32 0.0, %v1084
  %v1086 = vpop.f32.mrb[0].mxu0
  %1087 = vmatprep.mubr.f32.mxu0 0.0
  %1088 = vmatmul.mubr.f32.gmra.mrb[0].mxu0 %v689
  %v1089 = vpop.f32.mrb[0].mxu0
  %v1090 = vadd.f32 0.0, %v1089
  %v1091 = vpop.f32.mrb[0].mxu0
  %1092 = vmatprep.mubr.f32.mxu0 0.0
  %1093 = vmatmul.mubr.f32.gmra.mrb[0].mxu0 %v692
  %v1094 = vpop.f32.mrb[0].mxu0
  %v1095 = vadd.f32 0.0, %v1094
  %v1096 = vpop.f32.mrb[0].mxu0
  %1097 = vmatprep.mubr.f32.mxu0 0.0
  %1098 = vmatmul.mubr.f32.gmra.mrb[0].mxu0 %v695
  %v1099 = vpop.f32.mrb[0].mxu0
  %v1100 = vadd.f32 0.0, %v1099
  %v1101 = vpop.f32.mrb[0].mxu0
  %1102 = vmatprep.mubr.f32.mxu0 0.0
  %1103 = vmatmul.mubr.f32.gmra.mrb[0].mxu0 %v698
  %v1104 = vpop.f32.mrb[0].mxu0
  %v1105 = vadd.f32 0.0, %v1104
  %v1106 = vpop.f32.mrb[0].mxu0
  %1107 = vmatprep.mubr.f32.mxu0 0.0
  %1108 = vmatmul.mubr.f32.gmra.mrb[0].mxu0 %v701
  %v1109 = vpop.f32.mrb[0].mxu0
  %v1110 = vadd.f32 0.0, %v1109
  %v1111 = vpop.f32.mrb[0].mxu0
  %1112 = vmatprep.mubr.f32.mxu0 0.0
  %1113 = vmatmul.mubr.f32.gmra.mrb[0].mxu0 %v704
  %v1114 = vpop.f32.mrb[0].mxu0
  %v1115 = vadd.f32 0.0, %v1114
  %v1116 = vpop.f32.mrb[0].mxu0
  %1117 = vmatprep.mubr.f32.mxu0 0.0
  %1118 = vmatmul.mubr.f32.gmra.mrb[0].mxu0 %v707
  %v1119 = vpop.f32.mrb[0].mxu0
  %v1120 = vadd.f32 0.0, %v1119
  %v1121 = vpop.f32.mrb[0].mxu0
  %1122 = vmatprep.mubr.f32.mxu0 0.0
  %1123 = vmatmul.mubr.f32.gmra.mrb[0].mxu0 %v710
  %v1124 = vpop.f32.mrb[0].mxu0
  %v1125 = vadd.f32 0.0, %v1124
  %v1126 = vpop.f32.mrb[0].mxu0
  %1127 = vmatprep.mubr.f32.mxu0 0.0
  %1128 = vmatmul.mubr.f32.gmra.mrb[0].mxu0 %v713
  %v1129 = vpop.f32.mrb[0].mxu0
  %v1130 = vadd.f32 0.0, %v1129
  %v1131 = vpop.f32.mrb[0].mxu0
  %1132 = vmatprep.mubr.f32.mxu0 0.0
  %1133 = vmatmul.mubr.f32.gmra.mrb[0].mxu0 %v716
  %v1134 = vpop.f32.mrb[0].mxu0
  %v1135 = vadd.f32 0.0, %v1134
  %v1136 = vpop.f32.mrb[0].mxu0
  %1137 = vmatprep.mubr.f32.mxu0 0.0
  %1138 = vmatmul.mubr.f32.gmra.mrb[0].mxu0 %v719
  %v1139 = vpop.f32.mrb[0].mxu0
  %v1140 = vadd.f32 0.0, %v1139
  %v1141 = vpop.f32.mrb[0].mxu0
  %1142 = vmatprep.mubr.f32.mxu0 0.0
  %1143 = vmatmul.mubr.f32.gmra.mrb[0].mxu0 %v722
  %v1144 = vpop.f32.mrb[0].mxu0
  %v1145 = vadd.f32 0.0, %v1144
  %v1146 = vpop.f32.mrb[0].mxu0
  %1147 = vmatprep.mubr.f32.mxu0 0.0
  %1148 = vmatmul.mubr.f32.gmra.mrb[0].mxu0 %v725
  %v1149 = vpop.f32.mrb[0].mxu0
  %v1150 = vadd.f32 0.0, %v1149
  %v1151 = vpop.f32.mrb[0].mxu0
  %1152 = vmatprep.mubr.f32.mxu0 0.0
  %1153 = vmatmul.mubr.f32.gmra.mrb[0].mxu0 %v728
  %v1154 = vpop.f32.mrb[0].mxu0
  %v1155 = vadd.f32 0.0, %v1154
  %v1156 = vpop.f32.mrb[0].mxu0
  %1157 = vmatprep.mubr.f32.mxu0 0.0
  %1158 = vmatmul.mubr.f32.gmra.mrb[0].mxu0 %v731
  %v1159 = vpop.f32.mrb[0].mxu0
  %v1160 = vadd.f32 0.0, %v1159
  %v1161 = vpop.f32.mrb[0].mxu0
  %1162 = vmatprep.mubr.f32.mxu0 0.0
  %1163 = vmatmul.mubr.f32.gmra.mrb[0].mxu0 %v734
  %v1164 = vpop.f32.mrb[0].mxu0
  %v1165 = vadd.f32 0.0, %v1164
  %v1166 = vpop.f32.mrb[0].mxu0
  %1167 = vmatprep.mubr.f32.mxu0 0.0
  %1168 = vmatmul.mubr.f32.gmra.mrb[0].mxu0 %v737
  %v1169 = vpop.f32.mrb[0].mxu0
  %v1170 = vadd.f32 0.0, %v1169
  %v1171 = vpop.f32.mrb[0].mxu0
  %1172 = vmatprep.mubr.f32.mxu0 0.0
  %1173 = vmatmul.mubr.f32.gmra.mrb[0].mxu0 %v740
  %v1174 = vpop.f32.mrb[0].mxu0
  %v1175 = vadd.f32 0.0, %v1174
  %v1176 = vpop.f32.mrb[0].mxu0
  %1177 = vmatprep.mubr.f32.mxu0 0.0
  %1178 = vmatmul.mubr.f32.gmra.mrb[0].mxu0 %v743
  %v1179 = vpop.f32.mrb[0].mxu0
  %v1180 = vadd.f32 0.0, %v1179
  %v1181 = vpop.f32.mrb[0].mxu0
  %1182 = vmatprep.mubr.f32.mxu0 0.0
  %1183 = vmatmul.mubr.f32.gmra.mrb[0].mxu0 %v746
  %v1184 = vpop.f32.mrb[0].mxu0
  %v1185 = vadd.f32 0.0, %v1184
  %v1186 = vpop.f32.mrb[0].mxu0
  %1187 = vmatprep.mubr.f32.mxu0 0.0
  %1188 = vmatmul.mubr.f32.gmra.mrb[0].mxu0 %v749
  %v1189 = vpop.f32.mrb[0].mxu0
  %v1190 = vadd.f32 0.0, %v1189
  %v1191 = vpop.f32.mrb[0].mxu0
  %1192 = vmatprep.mubr.f32.mxu0 0.0
  %1193 = vmatmul.mubr.f32.gmra.mrb[0].mxu0 %v752
  %v1194 = vpop.f32.mrb[0].mxu0
  %v1195 = vadd.f32 0.0, %v1194
  %v1196 = vpop.f32.mrb[0].mxu0
  %1197 = vmatprep.mubr.f32.mxu0 0.0
  %1198 = vmatmul.mubr.f32.gmra.mrb[0].mxu0 %v755
  %v1199 = vpop.f32.mrb[0].mxu0
  %v1200 = vadd.f32 0.0, %v1199
  %v1201 = vpop.f32.mrb[0].mxu0
  %1202 = vmatprep.mubr.f32.mxu0 0.0
  %1203 = vmatmul.mubr.f32.gmra.mrb[0].mxu0 %v758
  %v1204 = vpop.f32.mrb[0].mxu0
  %v1205 = vadd.f32 0.0, %v1204
  %v1206 = vpop.f32.mrb[0].mxu0
  %1207 = vmatprep.mubr.f32.mxu0 0.0
  %1208 = vmatmul.mubr.f32.gmra.mrb[0].mxu0 %v761
  %v1209 = vpop.f32.mrb[0].mxu0
  %v1210 = vadd.f32 0.0, %v1209
  %v1211 = vpop.f32.mrb[0].mxu0
  %1212 = vdwg.mxu0
  %v1214 = vsel %vm69, %v1135, 0
  %v1217 = vsel %vm69, %v1140, 0
  %v1220 = vsel %vm69, %v1145, 0
  %v1223 = vsel %vm69, %v1150, 0
  %v1226 = vsel %vm69, %v1155, 0
  %v1229 = vsel %vm69, %v1160, 0
  %v1232 = vsel %vm69, %v1165, 0
  %v1235 = vsel %vm69, %v1170, 0
  %v1238 = vsel %vm69, %v1175, 0
  %v1241 = vsel %vm69, %v1180, 0
  %v1244 = vsel %vm69, %v1185, 0
  %v1247 = vsel %vm69, %v1190, 0
  %v1250 = vsel %vm69, %v1195, 0
  %v1253 = vsel %vm69, %v1200, 0
  %v1256 = vsel %vm69, %v1205, 0
  %v1259 = vsel %vm69, %v1210, 0
  %v1262 = vsel %vm181, %v36, 0
  %1264 = vmatprep.subr.mxu0 0.0
  %1265 = vmatpush1.msra.mxu0 %v35
  %1266 = vmatprep.subr.mxu0 0.0
  %1267 = vmatpush1.msra.mxu0 %v1262
  %1268 = vmatprep.subr.mxu0 0.0
  %1269 = vmatpush1.msra.mxu0 0.0
  %1270 = vmatprep.subr.mxu0 0.0
  %1271 = vmatpush1.msra.mxu0 0.0
  %1272 = vmatprep.subr.mxu0 0.0
  %1273 = vmatpush1.msra.mxu0 0.0
  %1274 = vmatprep.subr.mxu0 0.0
  %1275 = vmatpush1.msra.mxu0 0.0
  %1276 = vmatprep.subr.mxu0 0.0
  %1277 = vmatpush1.msra.mxu0 0.0
  %1278 = vmatprep.subr.mxu0 0.0
  %1279 = vmatpush1.msra.mxu0 0.0
  %1280 = vmatprep.subr.mxu0 0.0
  %1281 = vmatpush1.msra.mxu0 0.0
  %1282 = vmatprep.subr.mxu0 0.0
  %1283 = vmatpush1.msra.mxu0 0.0
  %1284 = vmatprep.subr.mxu0 0.0
  %1285 = vmatpush1.msra.mxu0 0.0
  %1286 = vmatprep.subr.mxu0 0.0
  %1287 = vmatpush1.msra.mxu0 0.0
  %1288 = vmatprep.subr.mxu0 0.0
  %1289 = vmatpush1.msra.mxu0 0.0
  %1290 = vmatprep.subr.mxu0 0.0
  %1291 = vmatpush1.msra.mxu0 0.0
  %1292 = vmatprep.subr.mxu0 0.0
  %1293 = vmatpush1.msra.mxu0 0.0
  %1294 = vmatprep.subr.mxu0 0.0
  %1295 = vmatpush1.msra.mxu0 0.0
  %1296 = vmatprep.subr.mxu0 0.0
  %1297 = vmatpush1.msra.mxu0 0.0
  %1298 = vmatprep.subr.mxu0 0.0
  %1299 = vmatpush1.msra.mxu0 0.0
  %1300 = vmatprep.subr.mxu0 0.0
  %1301 = vmatpush1.msra.mxu0 0.0
  %1302 = vmatprep.subr.mxu0 0.0
  %1303 = vmatpush1.msra.mxu0 0.0
  %1304 = vmatprep.subr.mxu0 0.0
  %1305 = vmatpush1.msra.mxu0 0.0
  %1306 = vmatprep.subr.mxu0 0.0
  %1307 = vmatpush1.msra.mxu0 0.0
  %1308 = vmatprep.subr.mxu0 0.0
  %1309 = vmatpush1.msra.mxu0 0.0
  %1310 = vmatprep.subr.mxu0 0.0
  %1311 = vmatpush1.msra.mxu0 0.0
  %1312 = vmatprep.subr.mxu0 0.0
  %1313 = vmatpush1.msra.mxu0 0.0
  %1314 = vmatprep.subr.mxu0 0.0
  %1315 = vmatpush1.msra.mxu0 0.0
  %1316 = vmatprep.subr.mxu0 0.0
  %1317 = vmatpush1.msra.mxu0 0.0
  %1318 = vmatprep.subr.mxu0 0.0
  %1319 = vmatpush1.msra.mxu0 0.0
  %1320 = vmatprep.subr.mxu0 0.0
  %1321 = vmatpush1.msra.mxu0 0.0
  %1322 = vmatprep.subr.mxu0 0.0
  %1323 = vmatpush1.msra.mxu0 0.0
  %1324 = vmatprep.subr.mxu0 0.0
  %1325 = vmatpush1.msra.mxu0 0.0
  %1326 = vmatprep.subr.mxu0 0.0
  %1327 = vmatpush1.msra.mxu0 0.0
  %1328 = vmatprep.mubr.f32.mxu0 0.0
  %1329 = vmatmul.mubr.f32.gmra.mrb[0].mxu0 %v1214
  %v1330 = vpop.f32.mrb[0].mxu0
  %v1331 = vadd.f32 0.0, %v1330
  %v1332 = vpop.f32.mrb[0].mxu0
  %1333 = vmatprep.mubr.f32.mxu0 0.0
  %1334 = vmatmul.mubr.f32.gmra.mrb[0].mxu0 %v1217
  %v1335 = vpop.f32.mrb[0].mxu0
  %v1336 = vadd.f32 0.0, %v1335
  %v1337 = vpop.f32.mrb[0].mxu0
  %1338 = vmatprep.mubr.f32.mxu0 0.0
  %1339 = vmatmul.mubr.f32.gmra.mrb[0].mxu0 %v1220
  %v1340 = vpop.f32.mrb[0].mxu0
  %v1341 = vadd.f32 0.0, %v1340
  %v1342 = vpop.f32.mrb[0].mxu0
  %1343 = vmatprep.mubr.f32.mxu0 0.0
  %1344 = vmatmul.mubr.f32.gmra.mrb[0].mxu0 %v1223
  %v1345 = vpop.f32.mrb[0].mxu0
  %v1346 = vadd.f32 0.0, %v1345
  %v1347 = vpop.f32.mrb[0].mxu0
  %1348 = vmatprep.mubr.f32.mxu0 0.0
  %1349 = vmatmul.mubr.f32.gmra.mrb[0].mxu0 %v1226
  %v1350 = vpop.f32.mrb[0].mxu0
  %v1351 = vadd.f32 0.0, %v1350
  %v1352 = vpop.f32.mrb[0].mxu0
  %1353 = vmatprep.mubr.f32.mxu0 0.0
  %1354 = vmatmul.mubr.f32.gmra.mrb[0].mxu0 %v1229
  %v1355 = vpop.f32.mrb[0].mxu0
  %v1356 = vadd.f32 0.0, %v1355
  %v1357 = vpop.f32.mrb[0].mxu0
  %1358 = vmatprep.mubr.f32.mxu0 0.0
  %1359 = vmatmul.mubr.f32.gmra.mrb[0].mxu0 %v1232
  %v1360 = vpop.f32.mrb[0].mxu0
  %v1361 = vadd.f32 0.0, %v1360
  %v1362 = vpop.f32.mrb[0].mxu0
  %1363 = vmatprep.mubr.f32.mxu0 0.0
  %1364 = vmatmul.mubr.f32.gmra.mrb[0].mxu0 %v1235
  %v1365 = vpop.f32.mrb[0].mxu0
  %v1366 = vadd.f32 0.0, %v1365
  %v1367 = vpop.f32.mrb[0].mxu0
  %1368 = vmatprep.mubr.f32.mxu0 0.0
  %1369 = vmatmul.mubr.f32.gmra.mrb[0].mxu0 %v1238
  %v1370 = vpop.f32.mrb[0].mxu0
  %v1371 = vadd.f32 0.0, %v1370
  %v1372 = vpop.f32.mrb[0].mxu0
  %1373 = vmatprep.mubr.f32.mxu0 0.0
  %1374 = vmatmul.mubr.f32.gmra.mrb[0].mxu0 %v1241
  %v1375 = vpop.f32.mrb[0].mxu0
  %v1376 = vadd.f32 0.0, %v1375
  %v1377 = vpop.f32.mrb[0].mxu0
  %1378 = vmatprep.mubr.f32.mxu0 0.0
  %1379 = vmatmul.mubr.f32.gmra.mrb[0].mxu0 %v1244
  %v1380 = vpop.f32.mrb[0].mxu0
  %v1381 = vadd.f32 0.0, %v1380
  %v1382 = vpop.f32.mrb[0].mxu0
  %1383 = vmatprep.mubr.f32.mxu0 0.0
  %1384 = vmatmul.mubr.f32.gmra.mrb[0].mxu0 %v1247
  %v1385 = vpop.f32.mrb[0].mxu0
  %v1386 = vadd.f32 0.0, %v1385
  %v1387 = vpop.f32.mrb[0].mxu0
  %1388 = vmatprep.mubr.f32.mxu0 0.0
  %1389 = vmatmul.mubr.f32.gmra.mrb[0].mxu0 %v1250
  %v1390 = vpop.f32.mrb[0].mxu0
  %v1391 = vadd.f32 0.0, %v1390
  %v1392 = vpop.f32.mrb[0].mxu0
  %1393 = vmatprep.mubr.f32.mxu0 0.0
  %1394 = vmatmul.mubr.f32.gmra.mrb[0].mxu0 %v1253
  %v1395 = vpop.f32.mrb[0].mxu0
  %v1396 = vadd.f32 0.0, %v1395
  %v1397 = vpop.f32.mrb[0].mxu0
  %1398 = vmatprep.mubr.f32.mxu0 0.0
  %1399 = vmatmul.mubr.f32.gmra.mrb[0].mxu0 %v1256
  %v1400 = vpop.f32.mrb[0].mxu0
  %v1401 = vadd.f32 0.0, %v1400
  %v1402 = vpop.f32.mrb[0].mxu0
  %1403 = vmatprep.mubr.f32.mxu0 0.0
  %1404 = vmatmul.mubr.f32.gmra.mrb[0].mxu0 %v1259
  %v1405 = vpop.f32.mrb[0].mxu0
  %v1406 = vadd.f32 0.0, %v1405
  %v1407 = vpop.f32.mrb[0].mxu0
  %1408 = vdwg.mxu0
  %v1410 = vsel %vm302, %v910, 0
  %v1413 = vsel %vm302, %v915, 0
  %v1416 = vsel %vm302, %v920, 0
  %v1419 = vsel %vm302, %v925, 0
  %v1422 = vsel %vm302, %v930, 0
  %v1425 = vsel %vm302, %v935, 0
  %v1428 = vsel %vm302, %v940, 0
  %v1431 = vsel %vm302, %v945, 0
  %v1434 = vsel %vm302, %v950, 0
  %v1437 = vsel %vm302, %v955, 0
  %v1440 = vsel %vm302, %v960, 0
  %v1443 = vsel %vm302, %v965, 0
  %v1446 = vsel %vm302, %v970, 0
  %v1449 = vsel %vm302, %v975, 0
  %v1452 = vsel %vm302, %v980, 0
  %v1455 = vsel %vm302, %v985, 0
  %1457 = vmatprep.subr.mxu0 0.0
  %1458 = vmatpush1.msra.mxu0 %v31
  %1459 = vmatprep.subr.mxu0 0.0
  %1460 = vmatpush1.msra.mxu0 %v32
  %1461 = vmatprep.subr.mxu0 0.0
  %1462 = vmatpush1.msra.mxu0 %v33
  %1463 = vmatprep.subr.mxu0 0.0
  %1464 = vmatpush1.msra.mxu0 %v34
  %1465 = vmatprep.subr.mxu0 0.0
  %1466 = vmatpush1.msra.mxu0 0.0
  %1467 = vmatprep.subr.mxu0 0.0
  %1468 = vmatpush1.msra.mxu0 0.0
  %1469 = vmatprep.subr.mxu0 0.0
  %1470 = vmatpush1.msra.mxu0 0.0
  %1471 = vmatprep.subr.mxu0 0.0
  %1472 = vmatpush1.msra.mxu0 0.0
  %1473 = vmatprep.subr.mxu0 0.0
  %1474 = vmatpush1.msra.mxu0 0.0
  %1475 = vmatprep.subr.mxu0 0.0
  %1476 = vmatpush1.msra.mxu0 0.0
  %1477 = vmatprep.subr.mxu0 0.0
  %1478 = vmatpush1.msra.mxu0 0.0
  %1479 = vmatprep.subr.mxu0 0.0
  %1480 = vmatpush1.msra.mxu0 0.0
  %1481 = vmatprep.subr.mxu0 0.0
  %1482 = vmatpush1.msra.mxu0 0.0
  %1483 = vmatprep.subr.mxu0 0.0
  %1484 = vmatpush1.msra.mxu0 0.0
  %1485 = vmatprep.subr.mxu0 0.0
  %1486 = vmatpush1.msra.mxu0 0.0
  %1487 = vmatprep.subr.mxu0 0.0
  %1488 = vmatpush1.msra.mxu0 0.0
  %1489 = vmatprep.subr.mxu0 0.0
  %1490 = vmatpush1.msra.mxu0 0.0
  %1491 = vmatprep.subr.mxu0 0.0
  %1492 = vmatpush1.msra.mxu0 0.0
  %1493 = vmatprep.subr.mxu0 0.0
  %1494 = vmatpush1.msra.mxu0 0.0
  %1495 = vmatprep.subr.mxu0 0.0
  %1496 = vmatpush1.msra.mxu0 0.0
  %1497 = vmatprep.subr.mxu0 0.0
  %1498 = vmatpush1.msra.mxu0 0.0
  %1499 = vmatprep.subr.mxu0 0.0
  %1500 = vmatpush1.msra.mxu0 0.0
  %1501 = vmatprep.subr.mxu0 0.0
  %1502 = vmatpush1.msra.mxu0 0.0
  %1503 = vmatprep.subr.mxu0 0.0
  %1504 = vmatpush1.msra.mxu0 0.0
  %1505 = vmatprep.subr.mxu0 0.0
  %1506 = vmatpush1.msra.mxu0 0.0
  %1507 = vmatprep.subr.mxu0 0.0
  %1508 = vmatpush1.msra.mxu0 0.0
  %1509 = vmatprep.subr.mxu0 0.0
  %1510 = vmatpush1.msra.mxu0 0.0
  %1511 = vmatprep.subr.mxu0 0.0
  %1512 = vmatpush1.msra.mxu0 0.0
  %1513 = vmatprep.subr.mxu0 0.0
  %1514 = vmatpush1.msra.mxu0 0.0
  %1515 = vmatprep.subr.mxu0 0.0
  %1516 = vmatpush1.msra.mxu0 0.0
  %1517 = vmatprep.subr.mxu0 0.0
  %1518 = vmatpush1.msra.mxu0 0.0
  %1519 = vmatprep.subr.mxu0 0.0
  %1520 = vmatpush1.msra.mxu0 0.0
  %1521 = vmatprep.mubr.f32.mxu0 0.0
  %1522 = vmatmul.mubr.f32.gmra.mrb[0].mxu0 %v1410
  %v1523 = vpop.f32.mrb[0].mxu0
  %v1524 = vadd.f32 %v1331, %v1523
  %v1525 = vpop.f32.mrb[0].mxu0
  %1526 = vmatprep.mubr.f32.mxu0 0.0
  %1527 = vmatmul.mubr.f32.gmra.mrb[0].mxu0 %v1413
  %v1528 = vpop.f32.mrb[0].mxu0
  %v1529 = vadd.f32 %v1336, %v1528
  %v1530 = vpop.f32.mrb[0].mxu0
  %1531 = vmatprep.mubr.f32.mxu0 0.0
  %1532 = vmatmul.mubr.f32.gmra.mrb[0].mxu0 %v1416
  %v1533 = vpop.f32.mrb[0].mxu0
  %v1534 = vadd.f32 %v1341, %v1533
  %v1535 = vpop.f32.mrb[0].mxu0
  %1536 = vmatprep.mubr.f32.mxu0 0.0
  %1537 = vmatmul.mubr.f32.gmra.mrb[0].mxu0 %v1419
  %v1538 = vpop.f32.mrb[0].mxu0
  %v1539 = vadd.f32 %v1346, %v1538
  %v1540 = vpop.f32.mrb[0].mxu0
  %1541 = vmatprep.mubr.f32.mxu0 0.0
  %1542 = vmatmul.mubr.f32.gmra.mrb[0].mxu0 %v1422
  %v1543 = vpop.f32.mrb[0].mxu0
  %v1544 = vadd.f32 %v1351, %v1543
  %v1545 = vpop.f32.mrb[0].mxu0
  %1546 = vmatprep.mubr.f32.mxu0 0.0
  %1547 = vmatmul.mubr.f32.gmra.mrb[0].mxu0 %v1425
  %v1548 = vpop.f32.mrb[0].mxu0
  %v1549 = vadd.f32 %v1356, %v1548
  %v1550 = vpop.f32.mrb[0].mxu0
  %1551 = vmatprep.mubr.f32.mxu0 0.0
  %1552 = vmatmul.mubr.f32.gmra.mrb[0].mxu0 %v1428
  %v1553 = vpop.f32.mrb[0].mxu0
  %v1554 = vadd.f32 %v1361, %v1553
  %v1555 = vpop.f32.mrb[0].mxu0
  %1556 = vmatprep.mubr.f32.mxu0 0.0
  %1557 = vmatmul.mubr.f32.gmra.mrb[0].mxu0 %v1431
  %v1558 = vpop.f32.mrb[0].mxu0
  %v1559 = vadd.f32 %v1366, %v1558
  %v1560 = vpop.f32.mrb[0].mxu0
  %1561 = vmatprep.mubr.f32.mxu0 0.0
  %1562 = vmatmul.mubr.f32.gmra.mrb[0].mxu0 %v1434
  %v1563 = vpop.f32.mrb[0].mxu0
  %v1564 = vadd.f32 %v1371, %v1563
  %v1565 = vpop.f32.mrb[0].mxu0
  %1566 = vmatprep.mubr.f32.mxu0 0.0
  %1567 = vmatmul.mubr.f32.gmra.mrb[0].mxu0 %v1437
  %v1568 = vpop.f32.mrb[0].mxu0
  %v1569 = vadd.f32 %v1376, %v1568
  %v1570 = vpop.f32.mrb[0].mxu0
  %1571 = vmatprep.mubr.f32.mxu0 0.0
  %1572 = vmatmul.mubr.f32.gmra.mrb[0].mxu0 %v1440
  %v1573 = vpop.f32.mrb[0].mxu0
  %v1574 = vadd.f32 %v1381, %v1573
  %v1575 = vpop.f32.mrb[0].mxu0
  %1576 = vmatprep.mubr.f32.mxu0 0.0
  %1577 = vmatmul.mubr.f32.gmra.mrb[0].mxu0 %v1443
  %v1578 = vpop.f32.mrb[0].mxu0
  %v1579 = vadd.f32 %v1386, %v1578
  %v1580 = vpop.f32.mrb[0].mxu0
  %1581 = vmatprep.mubr.f32.mxu0 0.0
  %1582 = vmatmul.mubr.f32.gmra.mrb[0].mxu0 %v1446
  %v1583 = vpop.f32.mrb[0].mxu0
  %v1584 = vadd.f32 %v1391, %v1583
  %v1585 = vpop.f32.mrb[0].mxu0
  %1586 = vmatprep.mubr.f32.mxu0 0.0
  %1587 = vmatmul.mubr.f32.gmra.mrb[0].mxu0 %v1449
  %v1588 = vpop.f32.mrb[0].mxu0
  %v1589 = vadd.f32 %v1396, %v1588
  %v1590 = vpop.f32.mrb[0].mxu0
  %1591 = vmatprep.mubr.f32.mxu0 0.0
  %1592 = vmatmul.mubr.f32.gmra.mrb[0].mxu0 %v1452
  %v1593 = vpop.f32.mrb[0].mxu0
  %v1594 = vadd.f32 %v1401, %v1593
  %v1595 = vpop.f32.mrb[0].mxu0
  %1596 = vmatprep.mubr.f32.mxu0 0.0
  %1597 = vmatmul.mubr.f32.gmra.mrb[0].mxu0 %v1455
  %v1598 = vpop.f32.mrb[0].mxu0
  %v1599 = vadd.f32 %v1406, %v1598
  %v1600 = vpop.f32.mrb[0].mxu0
  %1601 = vdwg.mxu0
  %v1603 = vsel %vm302, %v830, 0
  %v1606 = vsel %vm302, %v835, 0
  %v1609 = vsel %vm302, %v840, 0
  %v1612 = vsel %vm302, %v845, 0
  %v1615 = vsel %vm302, %v850, 0
  %v1618 = vsel %vm302, %v855, 0
  %v1621 = vsel %vm302, %v860, 0
  %v1624 = vsel %vm302, %v865, 0
  %v1627 = vsel %vm302, %v870, 0
  %v1630 = vsel %vm302, %v875, 0
  %v1633 = vsel %vm302, %v880, 0
  %v1636 = vsel %vm302, %v885, 0
  %v1639 = vsel %vm302, %v890, 0
  %v1642 = vsel %vm302, %v895, 0
  %v1645 = vsel %vm302, %v900, 0
  %v1648 = vsel %vm302, %v905, 0
  %1650 = vmatprep.subr.mxu0 0.0
  %1651 = vmatpush1.msra.mxu0 %v37
  %1652 = vmatprep.subr.mxu0 0.0
  %1653 = vmatpush1.msra.mxu0 %v38
  %1654 = vmatprep.subr.mxu0 0.0
  %1655 = vmatpush1.msra.mxu0 %v39
  %1656 = vmatprep.subr.mxu0 0.0
  %1657 = vmatpush1.msra.mxu0 %v40
  %1658 = vmatprep.subr.mxu0 0.0
  %1659 = vmatpush1.msra.mxu0 0.0
  %1660 = vmatprep.subr.mxu0 0.0
  %1661 = vmatpush1.msra.mxu0 0.0
  %1662 = vmatprep.subr.mxu0 0.0
  %1663 = vmatpush1.msra.mxu0 0.0
  %1664 = vmatprep.subr.mxu0 0.0
  %1665 = vmatpush1.msra.mxu0 0.0
  %1666 = vmatprep.subr.mxu0 0.0
  %1667 = vmatpush1.msra.mxu0 0.0
  %1668 = vmatprep.subr.mxu0 0.0
  %1669 = vmatpush1.msra.mxu0 0.0
  %1670 = vmatprep.subr.mxu0 0.0
  %1671 = vmatpush1.msra.mxu0 0.0
  %1672 = vmatprep.subr.mxu0 0.0
  %1673 = vmatpush1.msra.mxu0 0.0
  %1674 = vmatprep.subr.mxu0 0.0
  %1675 = vmatpush1.msra.mxu0 0.0
  %1676 = vmatprep.subr.mxu0 0.0
  %1677 = vmatpush1.msra.mxu0 0.0
  %1678 = vmatprep.subr.mxu0 0.0
  %1679 = vmatpush1.msra.mxu0 0.0
  %1680 = vmatprep.subr.mxu0 0.0
  %1681 = vmatpush1.msra.mxu0 0.0
  %1682 = vmatprep.subr.mxu0 0.0
  %1683 = vmatpush1.msra.mxu0 0.0
  %1684 = vmatprep.subr.mxu0 0.0
  %1685 = vmatpush1.msra.mxu0 0.0
  %1686 = vmatprep.subr.mxu0 0.0
  %1687 = vmatpush1.msra.mxu0 0.0
  %1688 = vmatprep.subr.mxu0 0.0
  %1689 = vmatpush1.msra.mxu0 0.0
  %1690 = vmatprep.subr.mxu0 0.0
  %1691 = vmatpush1.msra.mxu0 0.0
  %1692 = vmatprep.subr.mxu0 0.0
  %1693 = vmatpush1.msra.mxu0 0.0
  %1694 = vmatprep.subr.mxu0 0.0
  %1695 = vmatpush1.msra.mxu0 0.0
  %1696 = vmatprep.subr.mxu0 0.0
  %1697 = vmatpush1.msra.mxu0 0.0
  %1698 = vmatprep.subr.mxu0 0.0
  %1699 = vmatpush1.msra.mxu0 0.0
  %1700 = vmatprep.subr.mxu0 0.0
  %1701 = vmatpush1.msra.mxu0 0.0
  %1702 = vmatprep.subr.mxu0 0.0
  %1703 = vmatpush1.msra.mxu0 0.0
  %1704 = vmatprep.subr.mxu0 0.0
  %1705 = vmatpush1.msra.mxu0 0.0
  %1706 = vmatprep.subr.mxu0 0.0
  %1707 = vmatpush1.msra.mxu0 0.0
  %1708 = vmatprep.subr.mxu0 0.0
  %1709 = vmatpush1.msra.mxu0 0.0
  %1710 = vmatprep.subr.mxu0 0.0
  %1711 = vmatpush1.msra.mxu0 0.0
  %1712 = vmatprep.subr.mxu0 0.0
  %1713 = vmatpush1.msra.mxu0 0.0
  %1714 = vmatprep.mubr.f32.mxu0 0.0
  %1715 = vmatmul.mubr.f32.gmra.mrb[0].mxu0 %v1603
  %v1716 = vpop.f32.mrb[0].mxu0
  %v1717 = vadd.f32 0.0, %v1716
  %v1718 = vpop.f32.mrb[0].mxu0
  %1719 = vmatprep.mubr.f32.mxu0 0.0
  %1720 = vmatmul.mubr.f32.gmra.mrb[0].mxu0 %v1606
  %v1721 = vpop.f32.mrb[0].mxu0
  %v1722 = vadd.f32 0.0, %v1721
  %v1723 = vpop.f32.mrb[0].mxu0
  %1724 = vmatprep.mubr.f32.mxu0 0.0
  %1725 = vmatmul.mubr.f32.gmra.mrb[0].mxu0 %v1609
  %v1726 = vpop.f32.mrb[0].mxu0
  %v1727 = vadd.f32 0.0, %v1726
  %v1728 = vpop.f32.mrb[0].mxu0
  %1729 = vmatprep.mubr.f32.mxu0 0.0
  %1730 = vmatmul.mubr.f32.gmra.mrb[0].mxu0 %v1612
  %v1731 = vpop.f32.mrb[0].mxu0
  %v1732 = vadd.f32 0.0, %v1731
  %v1733 = vpop.f32.mrb[0].mxu0
  %1734 = vmatprep.mubr.f32.mxu0 0.0
  %1735 = vmatmul.mubr.f32.gmra.mrb[0].mxu0 %v1615
  %v1736 = vpop.f32.mrb[0].mxu0
  %v1737 = vadd.f32 0.0, %v1736
  %v1738 = vpop.f32.mrb[0].mxu0
  %1739 = vmatprep.mubr.f32.mxu0 0.0
  %1740 = vmatmul.mubr.f32.gmra.mrb[0].mxu0 %v1618
  %v1741 = vpop.f32.mrb[0].mxu0
  %v1742 = vadd.f32 0.0, %v1741
  %v1743 = vpop.f32.mrb[0].mxu0
  %1744 = vmatprep.mubr.f32.mxu0 0.0
  %1745 = vmatmul.mubr.f32.gmra.mrb[0].mxu0 %v1621
  %v1746 = vpop.f32.mrb[0].mxu0
  %v1747 = vadd.f32 0.0, %v1746
  %v1748 = vpop.f32.mrb[0].mxu0
  %1749 = vmatprep.mubr.f32.mxu0 0.0
  %1750 = vmatmul.mubr.f32.gmra.mrb[0].mxu0 %v1624
  %v1751 = vpop.f32.mrb[0].mxu0
  %v1752 = vadd.f32 0.0, %v1751
  %v1753 = vpop.f32.mrb[0].mxu0
  %1754 = vmatprep.mubr.f32.mxu0 0.0
  %1755 = vmatmul.mubr.f32.gmra.mrb[0].mxu0 %v1627
  %v1756 = vpop.f32.mrb[0].mxu0
  %v1757 = vadd.f32 0.0, %v1756
  %v1758 = vpop.f32.mrb[0].mxu0
  %1759 = vmatprep.mubr.f32.mxu0 0.0
  %1760 = vmatmul.mubr.f32.gmra.mrb[0].mxu0 %v1630
  %v1761 = vpop.f32.mrb[0].mxu0
  %v1762 = vadd.f32 0.0, %v1761
  %v1763 = vpop.f32.mrb[0].mxu0
  %1764 = vmatprep.mubr.f32.mxu0 0.0
  %1765 = vmatmul.mubr.f32.gmra.mrb[0].mxu0 %v1633
  %v1766 = vpop.f32.mrb[0].mxu0
  %v1767 = vadd.f32 0.0, %v1766
  %v1768 = vpop.f32.mrb[0].mxu0
  %1769 = vmatprep.mubr.f32.mxu0 0.0
  %1770 = vmatmul.mubr.f32.gmra.mrb[0].mxu0 %v1636
  %v1771 = vpop.f32.mrb[0].mxu0
  %v1772 = vadd.f32 0.0, %v1771
  %v1773 = vpop.f32.mrb[0].mxu0
  %1774 = vmatprep.mubr.f32.mxu0 0.0
  %1775 = vmatmul.mubr.f32.gmra.mrb[0].mxu0 %v1639
  %v1776 = vpop.f32.mrb[0].mxu0
  %v1777 = vadd.f32 0.0, %v1776
  %v1778 = vpop.f32.mrb[0].mxu0
  %1779 = vmatprep.mubr.f32.mxu0 0.0
  %1780 = vmatmul.mubr.f32.gmra.mrb[0].mxu0 %v1642
  %v1781 = vpop.f32.mrb[0].mxu0
  %v1782 = vadd.f32 0.0, %v1781
  %v1783 = vpop.f32.mrb[0].mxu0
  %1784 = vmatprep.mubr.f32.mxu0 0.0
  %1785 = vmatmul.mubr.f32.gmra.mrb[0].mxu0 %v1645
  %v1786 = vpop.f32.mrb[0].mxu0
  %v1787 = vadd.f32 0.0, %v1786
  %v1788 = vpop.f32.mrb[0].mxu0
  %1789 = vmatprep.mubr.f32.mxu0 0.0
  %1790 = vmatmul.mubr.f32.gmra.mrb[0].mxu0 %v1648
  %v1791 = vpop.f32.mrb[0].mxu0
  %v1792 = vadd.f32 0.0, %v1791
  %v1793 = vpop.f32.mrb[0].mxu0
  %1794 = vdwg.mxu0
  %v1795 = vadd.f32 %v1524, %v1717
  %v1796 = vadd.f32 %v1529, %v1722
  %v1797 = vadd.f32 %v1534, %v1727
  %v1798 = vadd.f32 %v1539, %v1732
  %v1799 = vadd.f32 %v1544, %v1737
  %v1800 = vadd.f32 %v1549, %v1742
  %v1801 = vadd.f32 %v1554, %v1747
  %v1802 = vadd.f32 %v1559, %v1752
  %v1803 = vadd.f32 %v1564, %v1757
  %v1804 = vadd.f32 %v1569, %v1762
  %v1805 = vadd.f32 %v1574, %v1767
  %v1806 = vadd.f32 %v1579, %v1772
  %v1807 = vadd.f32 %v1584, %v1777
  %v1808 = vadd.f32 %v1589, %v1782
  %v1809 = vadd.f32 %v1594, %v1787
  %v1810 = vadd.f32 %v1599, %v1792
  %v1812 = vsel %vm69, %v1055, 0
  %v1815 = vsel %vm69, %v1060, 0
  %v1818 = vsel %vm69, %v1065, 0
  %v1821 = vsel %vm69, %v1070, 0
  %v1824 = vsel %vm69, %v1075, 0
  %v1827 = vsel %vm69, %v1080, 0
  %v1830 = vsel %vm69, %v1085, 0
  %v1833 = vsel %vm69, %v1090, 0
  %v1836 = vsel %vm69, %v1095, 0
  %v1839 = vsel %vm69, %v1100, 0
  %v1842 = vsel %vm69, %v1105, 0
  %v1845 = vsel %vm69, %v1110, 0
  %v1848 = vsel %vm69, %v1115, 0
  %v1851 = vsel %vm69, %v1120, 0
  %v1854 = vsel %vm69, %v1125, 0
  %v1857 = vsel %vm69, %v1130, 0
  %v1860 = vsel %vm181, %v42, 0
  %1862 = vmatprep.subr.mxu0 0.0
  %1863 = vmatpush1.msra.mxu0 %v41
  %1864 = vmatprep.subr.mxu0 0.0
  %1865 = vmatpush1.msra.mxu0 %v1860
  %1866 = vmatprep.subr.mxu0 0.0
  %1867 = vmatpush1.msra.mxu0 0.0
  %1868 = vmatprep.subr.mxu0 0.0
  %1869 = vmatpush1.msra.mxu0 0.0
  %1870 = vmatprep.subr.mxu0 0.0
  %1871 = vmatpush1.msra.mxu0 0.0
  %1872 = vmatprep.subr.mxu0 0.0
  %1873 = vmatpush1.msra.mxu0 0.0
  %1874 = vmatprep.subr.mxu0 0.0
  %1875 = vmatpush1.msra.mxu0 0.0
  %1876 = vmatprep.subr.mxu0 0.0
  %1877 = vmatpush1.msra.mxu0 0.0
  %1878 = vmatprep.subr.mxu0 0.0
  %1879 = vmatpush1.msra.mxu0 0.0
  %1880 = vmatprep.subr.mxu0 0.0
  %1881 = vmatpush1.msra.mxu0 0.0
  %1882 = vmatprep.subr.mxu0 0.0
  %1883 = vmatpush1.msra.mxu0 0.0
  %1884 = vmatprep.subr.mxu0 0.0
  %1885 = vmatpush1.msra.mxu0 0.0
  %1886 = vmatprep.subr.mxu0 0.0
  %1887 = vmatpush1.msra.mxu0 0.0
  %1888 = vmatprep.subr.mxu0 0.0
  %1889 = vmatpush1.msra.mxu0 0.0
  %1890 = vmatprep.subr.mxu0 0.0
  %1891 = vmatpush1.msra.mxu0 0.0
  %1892 = vmatprep.subr.mxu0 0.0
  %1893 = vmatpush1.msra.mxu0 0.0
  %1894 = vmatprep.subr.mxu0 0.0
  %1895 = vmatpush1.msra.mxu0 0.0
  %1896 = vmatprep.subr.mxu0 0.0
  %1897 = vmatpush1.msra.mxu0 0.0
  %1898 = vmatprep.subr.mxu0 0.0
  %1899 = vmatpush1.msra.mxu0 0.0
  %1900 = vmatprep.subr.mxu0 0.0
  %1901 = vmatpush1.msra.mxu0 0.0
  %1902 = vmatprep.subr.mxu0 0.0
  %1903 = vmatpush1.msra.mxu0 0.0
  %1904 = vmatprep.subr.mxu0 0.0
  %1905 = vmatpush1.msra.mxu0 0.0
  %1906 = vmatprep.subr.mxu0 0.0
  %1907 = vmatpush1.msra.mxu0 0.0
  %1908 = vmatprep.subr.mxu0 0.0
  %1909 = vmatpush1.msra.mxu0 0.0
  %1910 = vmatprep.subr.mxu0 0.0
  %1911 = vmatpush1.msra.mxu0 0.0
  %1912 = vmatprep.subr.mxu0 0.0
  %1913 = vmatpush1.msra.mxu0 0.0
  %1914 = vmatprep.subr.mxu0 0.0
  %1915 = vmatpush1.msra.mxu0 0.0
  %1916 = vmatprep.subr.mxu0 0.0
  %1917 = vmatpush1.msra.mxu0 0.0
  %1918 = vmatprep.subr.mxu0 0.0
  %1919 = vmatpush1.msra.mxu0 0.0
  %1920 = vmatprep.subr.mxu0 0.0
  %1921 = vmatpush1.msra.mxu0 0.0
  %1922 = vmatprep.subr.mxu0 0.0
  %1923 = vmatpush1.msra.mxu0 0.0
  %1924 = vmatprep.subr.mxu0 0.0
  %1925 = vmatpush1.msra.mxu0 0.0
  %1926 = vmatprep.mubr.f32.mxu0 0.0
  %1927 = vmatmul.mubr.f32.gmra.mrb[0].mxu0 %v1812
  %v1928 = vpop.f32.mrb[0].mxu0
  %v1929 = vadd.f32 0.0, %v1928
  %v1930 = vpop.f32.mrb[0].mxu0
  %1931 = vmatprep.mubr.f32.mxu0 0.0
  %1932 = vmatmul.mubr.f32.gmra.mrb[0].mxu0 %v1815
  %v1933 = vpop.f32.mrb[0].mxu0
  %v1934 = vadd.f32 0.0, %v1933
  %v1935 = vpop.f32.mrb[0].mxu0
  %1936 = vmatprep.mubr.f32.mxu0 0.0
  %1937 = vmatmul.mubr.f32.gmra.mrb[0].mxu0 %v1818
  %v1938 = vpop.f32.mrb[0].mxu0
  %v1939 = vadd.f32 0.0, %v1938
  %v1940 = vpop.f32.mrb[0].mxu0
  %1941 = vmatprep.mubr.f32.mxu0 0.0
  %1942 = vmatmul.mubr.f32.gmra.mrb[0].mxu0 %v1821
  %v1943 = vpop.f32.mrb[0].mxu0
  %v1944 = vadd.f32 0.0, %v1943
  %v1945 = vpop.f32.mrb[0].mxu0
  %1946 = vmatprep.mubr.f32.mxu0 0.0
  %1947 = vmatmul.mubr.f32.gmra.mrb[0].mxu0 %v1824
  %v1948 = vpop.f32.mrb[0].mxu0
  %v1949 = vadd.f32 0.0, %v1948
  %v1950 = vpop.f32.mrb[0].mxu0
  %1951 = vmatprep.mubr.f32.mxu0 0.0
  %1952 = vmatmul.mubr.f32.gmra.mrb[0].mxu0 %v1827
  %v1953 = vpop.f32.mrb[0].mxu0
  %v1954 = vadd.f32 0.0, %v1953
  %v1955 = vpop.f32.mrb[0].mxu0
  %1956 = vmatprep.mubr.f32.mxu0 0.0
  %1957 = vmatmul.mubr.f32.gmra.mrb[0].mxu0 %v1830
  %v1958 = vpop.f32.mrb[0].mxu0
  %v1959 = vadd.f32 0.0, %v1958
  %v1960 = vpop.f32.mrb[0].mxu0
  %1961 = vmatprep.mubr.f32.mxu0 0.0
  %1962 = vmatmul.mubr.f32.gmra.mrb[0].mxu0 %v1833
  %v1963 = vpop.f32.mrb[0].mxu0
  %v1964 = vadd.f32 0.0, %v1963
  %v1965 = vpop.f32.mrb[0].mxu0
  %1966 = vmatprep.mubr.f32.mxu0 0.0
  %1967 = vmatmul.mubr.f32.gmra.mrb[0].mxu0 %v1836
  %v1968 = vpop.f32.mrb[0].mxu0
  %v1969 = vadd.f32 0.0, %v1968
  %v1970 = vpop.f32.mrb[0].mxu0
  %1971 = vmatprep.mubr.f32.mxu0 0.0
  %1972 = vmatmul.mubr.f32.gmra.mrb[0].mxu0 %v1839
  %v1973 = vpop.f32.mrb[0].mxu0
  %v1974 = vadd.f32 0.0, %v1973
  %v1975 = vpop.f32.mrb[0].mxu0
  %1976 = vmatprep.mubr.f32.mxu0 0.0
  %1977 = vmatmul.mubr.f32.gmra.mrb[0].mxu0 %v1842
  %v1978 = vpop.f32.mrb[0].mxu0
  %v1979 = vadd.f32 0.0, %v1978
  %v1980 = vpop.f32.mrb[0].mxu0
  %1981 = vmatprep.mubr.f32.mxu0 0.0
  %1982 = vmatmul.mubr.f32.gmra.mrb[0].mxu0 %v1845
  %v1983 = vpop.f32.mrb[0].mxu0
  %v1984 = vadd.f32 0.0, %v1983
  %v1985 = vpop.f32.mrb[0].mxu0
  %1986 = vmatprep.mubr.f32.mxu0 0.0
  %1987 = vmatmul.mubr.f32.gmra.mrb[0].mxu0 %v1848
  %v1988 = vpop.f32.mrb[0].mxu0
  %v1989 = vadd.f32 0.0, %v1988
  %v1990 = vpop.f32.mrb[0].mxu0
  %1991 = vmatprep.mubr.f32.mxu0 0.0
  %1992 = vmatmul.mubr.f32.gmra.mrb[0].mxu0 %v1851
  %v1993 = vpop.f32.mrb[0].mxu0
  %v1994 = vadd.f32 0.0, %v1993
  %v1995 = vpop.f32.mrb[0].mxu0
  %1996 = vmatprep.mubr.f32.mxu0 0.0
  %1997 = vmatmul.mubr.f32.gmra.mrb[0].mxu0 %v1854
  %v1998 = vpop.f32.mrb[0].mxu0
  %v1999 = vadd.f32 0.0, %v1998
  %v2000 = vpop.f32.mrb[0].mxu0
  %2001 = vmatprep.mubr.f32.mxu0 0.0
  %2002 = vmatmul.mubr.f32.gmra.mrb[0].mxu0 %v1857
  %v2003 = vpop.f32.mrb[0].mxu0
  %v2004 = vadd.f32 0.0, %v2003
  %v2005 = vpop.f32.mrb[0].mxu0
  %2006 = vdwg.mxu0
  %v2007 = vadd.f32 %v1795, %v1929
  %v2008 = vadd.f32 %v1796, %v1934
  %v2009 = vadd.f32 %v1797, %v1939
  %v2010 = vadd.f32 %v1798, %v1944
  %v2011 = vadd.f32 %v1799, %v1949
  %v2012 = vadd.f32 %v1800, %v1954
  %v2013 = vadd.f32 %v1801, %v1959
  %v2014 = vadd.f32 %v1802, %v1964
  %v2015 = vadd.f32 %v1803, %v1969
  %v2016 = vadd.f32 %v1804, %v1974
  %v2017 = vadd.f32 %v1805, %v1979
  %v2018 = vadd.f32 %v1806, %v1984
  %v2019 = vadd.f32 %v1807, %v1989
  %v2020 = vadd.f32 %v1808, %v1994
  %v2021 = vadd.f32 %v1809, %v1999
  %v2022 = vadd.f32 %v1810, %v2004
  %v2023 = vlaneseq
  %v2024 = vshrl.u32 %v2023, 7
  %v2025 = vsub.s32 0, %v2024
  %v2026 = vrot.slane %v65, %v2025
  %v2027 = vadd.f32 %v2007, %v2026
  %v2028 = vadd.f32 %v2008, %v2026
  %v2029 = vadd.f32 %v2009, %v2026
  %v2030 = vadd.f32 %v2010, %v2026
  %v2031 = vadd.f32 %v2011, %v2026
  %v2032 = vadd.f32 %v2012, %v2026
  %v2033 = vadd.f32 %v2013, %v2026
  %v2034 = vadd.f32 %v2014, %v2026
  %v2035 = vadd.f32 %v2015, %v2026
  %v2036 = vadd.f32 %v2016, %v2026
  %v2037 = vadd.f32 %v2017, %v2026
  %v2038 = vadd.f32 %v2018, %v2026
  %v2039 = vadd.f32 %v2019, %v2026
  %v2040 = vadd.f32 %v2020, %v2026
  %v2041 = vadd.f32 %v2021, %v2026
  %v2042 = vadd.f32 %v2022, %v2026
  %v2043 = vmax.f32 %v2027, 0.0
  %v2044 = vmax.f32 %v2028, 0.0
  %v2045 = vmax.f32 %v2029, 0.0
  %v2046 = vmax.f32 %v2030, 0.0
  %v2047 = vmax.f32 %v2031, 0.0
  %v2048 = vmax.f32 %v2032, 0.0
  %v2049 = vmax.f32 %v2033, 0.0
  %v2050 = vmax.f32 %v2034, 0.0
  %v2051 = vmax.f32 %v2035, 0.0
  %v2052 = vmax.f32 %v2036, 0.0
  %v2053 = vmax.f32 %v2037, 0.0
  %v2054 = vmax.f32 %v2038, 0.0
  %v2055 = vmax.f32 %v2039, 0.0
  %v2056 = vmax.f32 %v2040, 0.0
  %v2057 = vmax.f32 %v2041, 0.0
  %v2058 = vmax.f32 %v2042, 0.0
  %v2059 = vlaneseq
  %v2060 = vshrl.u32 %v2059, 7
  %v2061 = vsub.s32 0, %v2060
  %v2062 = vrot.slane %v66, %v2061
  %v2064 = vsel %vm666, %v2043, 0
  %v2067 = vsel %vm666, %v2044, 0
  %v2070 = vsel %vm666, %v2045, 0
  %v2073 = vsel %vm666, %v2046, 0
  %v2076 = vsel %vm666, %v2047, 0
  %v2079 = vsel %vm666, %v2048, 0
  %v2082 = vsel %vm666, %v2049, 0
  %v2085 = vsel %vm666, %v2050, 0
  %v2088 = vsel %vm666, %v2051, 0
  %v2091 = vsel %vm666, %v2052, 0
  %v2094 = vsel %vm666, %v2053, 0
  %v2097 = vsel %vm666, %v2054, 0
  %v2100 = vsel %vm666, %v2055, 0
  %v2103 = vsel %vm666, %v2056, 0
  %v2106 = vsel %vm666, %v2057, 0
  %v2109 = vsel %vm666, %v2058, 0
  %2111 = vmatprep.subr.mxu0 0.0
  %2112 = vmatpush1.msra.mxu0 %v43
  %2113 = vmatprep.subr.mxu0 0.0
  %2114 = vmatpush1.msra.mxu0 %v44
  %2115 = vmatprep.subr.mxu0 0.0
  %2116 = vmatpush1.msra.mxu0 %v45
  %2117 = vmatprep.subr.mxu0 0.0
  %2118 = vmatpush1.msra.mxu0 %v46
  %2119 = vmatprep.subr.mxu0 0.0
  %2120 = vmatpush1.msra.mxu0 %v47
  %2121 = vmatprep.subr.mxu0 0.0
  %2122 = vmatpush1.msra.mxu0 %v48
  %2123 = vmatprep.subr.mxu0 0.0
  %2124 = vmatpush1.msra.mxu0 %v49
  %2125 = vmatprep.subr.mxu0 0.0
  %2126 = vmatpush1.msra.mxu0 %v50
  %2127 = vmatprep.subr.mxu0 0.0
  %2128 = vmatpush1.msra.mxu0 0.0
  %2129 = vmatprep.subr.mxu0 0.0
  %2130 = vmatpush1.msra.mxu0 0.0
  %2131 = vmatprep.subr.mxu0 0.0
  %2132 = vmatpush1.msra.mxu0 0.0
  %2133 = vmatprep.subr.mxu0 0.0
  %2134 = vmatpush1.msra.mxu0 0.0
  %2135 = vmatprep.subr.mxu0 0.0
  %2136 = vmatpush1.msra.mxu0 0.0
  %2137 = vmatprep.subr.mxu0 0.0
  %2138 = vmatpush1.msra.mxu0 0.0
  %2139 = vmatprep.subr.mxu0 0.0
  %2140 = vmatpush1.msra.mxu0 0.0
  %2141 = vmatprep.subr.mxu0 0.0
  %2142 = vmatpush1.msra.mxu0 0.0
  %2143 = vmatprep.subr.mxu0 0.0
  %2144 = vmatpush1.msra.mxu0 0.0
  %2145 = vmatprep.subr.mxu0 0.0
  %2146 = vmatpush1.msra.mxu0 0.0
  %2147 = vmatprep.subr.mxu0 0.0
  %2148 = vmatpush1.msra.mxu0 0.0
  %2149 = vmatprep.subr.mxu0 0.0
  %2150 = vmatpush1.msra.mxu0 0.0
  %2151 = vmatprep.subr.mxu0 0.0
  %2152 = vmatpush1.msra.mxu0 0.0
  %2153 = vmatprep.subr.mxu0 0.0
  %2154 = vmatpush1.msra.mxu0 0.0
  %2155 = vmatprep.subr.mxu0 0.0
  %2156 = vmatpush1.msra.mxu0 0.0
  %2157 = vmatprep.subr.mxu0 0.0
  %2158 = vmatpush1.msra.mxu0 0.0
  %2159 = vmatprep.subr.mxu0 0.0
  %2160 = vmatpush1.msra.mxu0 0.0
  %2161 = vmatprep.subr.mxu0 0.0
  %2162 = vmatpush1.msra.mxu0 0.0
  %2163 = vmatprep.subr.mxu0 0.0
  %2164 = vmatpush1.msra.mxu0 0.0
  %2165 = vmatprep.subr.mxu0 0.0
  %2166 = vmatpush1.msra.mxu0 0.0
  %2167 = vmatprep.subr.mxu0 0.0
  %2168 = vmatpush1.msra.mxu0 0.0
  %2169 = vmatprep.subr.mxu0 0.0
  %2170 = vmatpush1.msra.mxu0 0.0
  %2171 = vmatprep.subr.mxu0 0.0
  %2172 = vmatpush1.msra.mxu0 0.0
  %2173 = vmatprep.subr.mxu0 0.0
  %2174 = vmatpush1.msra.mxu0 0.0
  %2175 = vmatprep.mubr.f32.mxu0 0.0
  %2176 = vmatmul.mubr.f32.gmra.mrb[0].mxu0 %v2064
  %v2177 = vpop.f32.mrb[0].mxu0
  %v2178 = vadd.f32 %v2062, %v2177
  %v2179 = vpop.f32.mrb[0].mxu0
  %2180 = vmatprep.mubr.f32.mxu0 0.0
  %2181 = vmatmul.mubr.f32.gmra.mrb[0].mxu0 %v2067
  %v2182 = vpop.f32.mrb[0].mxu0
  %v2183 = vadd.f32 %v2062, %v2182
  %v2184 = vpop.f32.mrb[0].mxu0
  %2185 = vmatprep.mubr.f32.mxu0 0.0
  %2186 = vmatmul.mubr.f32.gmra.mrb[0].mxu0 %v2070
  %v2187 = vpop.f32.mrb[0].mxu0
  %v2188 = vadd.f32 %v2062, %v2187
  %v2189 = vpop.f32.mrb[0].mxu0
  %2190 = vmatprep.mubr.f32.mxu0 0.0
  %2191 = vmatmul.mubr.f32.gmra.mrb[0].mxu0 %v2073
  %v2192 = vpop.f32.mrb[0].mxu0
  %v2193 = vadd.f32 %v2062, %v2192
  %v2194 = vpop.f32.mrb[0].mxu0
  %2195 = vmatprep.mubr.f32.mxu0 0.0
  %2196 = vmatmul.mubr.f32.gmra.mrb[0].mxu0 %v2076
  %v2197 = vpop.f32.mrb[0].mxu0
  %v2198 = vadd.f32 %v2062, %v2197
  %v2199 = vpop.f32.mrb[0].mxu0
  %2200 = vmatprep.mubr.f32.mxu0 0.0
  %2201 = vmatmul.mubr.f32.gmra.mrb[0].mxu0 %v2079
  %v2202 = vpop.f32.mrb[0].mxu0
  %v2203 = vadd.f32 %v2062, %v2202
  %v2204 = vpop.f32.mrb[0].mxu0
  %2205 = vmatprep.mubr.f32.mxu0 0.0
  %2206 = vmatmul.mubr.f32.gmra.mrb[0].mxu0 %v2082
  %v2207 = vpop.f32.mrb[0].mxu0
  %v2208 = vadd.f32 %v2062, %v2207
  %v2209 = vpop.f32.mrb[0].mxu0
  %2210 = vmatprep.mubr.f32.mxu0 0.0
  %2211 = vmatmul.mubr.f32.gmra.mrb[0].mxu0 %v2085
  %v2212 = vpop.f32.mrb[0].mxu0
  %v2213 = vadd.f32 %v2062, %v2212
  %v2214 = vpop.f32.mrb[0].mxu0
  %2215 = vmatprep.mubr.f32.mxu0 0.0
  %2216 = vmatmul.mubr.f32.gmra.mrb[0].mxu0 %v2088
  %v2217 = vpop.f32.mrb[0].mxu0
  %v2218 = vadd.f32 %v2062, %v2217
  %v2219 = vpop.f32.mrb[0].mxu0
  %2220 = vmatprep.mubr.f32.mxu0 0.0
  %2221 = vmatmul.mubr.f32.gmra.mrb[0].mxu0 %v2091
  %v2222 = vpop.f32.mrb[0].mxu0
  %v2223 = vadd.f32 %v2062, %v2222
  %v2224 = vpop.f32.mrb[0].mxu0
  %2225 = vmatprep.mubr.f32.mxu0 0.0
  %2226 = vmatmul.mubr.f32.gmra.mrb[0].mxu0 %v2094
  %v2227 = vpop.f32.mrb[0].mxu0
  %v2228 = vadd.f32 %v2062, %v2227
  %v2229 = vpop.f32.mrb[0].mxu0
  %2230 = vmatprep.mubr.f32.mxu0 0.0
  %2231 = vmatmul.mubr.f32.gmra.mrb[0].mxu0 %v2097
  %v2232 = vpop.f32.mrb[0].mxu0
  %v2233 = vadd.f32 %v2062, %v2232
  %v2234 = vpop.f32.mrb[0].mxu0
  %2235 = vmatprep.mubr.f32.mxu0 0.0
  %2236 = vmatmul.mubr.f32.gmra.mrb[0].mxu0 %v2100
  %v2237 = vpop.f32.mrb[0].mxu0
  %v2238 = vadd.f32 %v2062, %v2237
  %v2239 = vpop.f32.mrb[0].mxu0
  %2240 = vmatprep.mubr.f32.mxu0 0.0
  %2241 = vmatmul.mubr.f32.gmra.mrb[0].mxu0 %v2103
  %v2242 = vpop.f32.mrb[0].mxu0
  %v2243 = vadd.f32 %v2062, %v2242
  %v2244 = vpop.f32.mrb[0].mxu0
  %2245 = vmatprep.mubr.f32.mxu0 0.0
  %2246 = vmatmul.mubr.f32.gmra.mrb[0].mxu0 %v2106
  %v2247 = vpop.f32.mrb[0].mxu0
  %v2248 = vadd.f32 %v2062, %v2247
  %v2249 = vpop.f32.mrb[0].mxu0
  %2250 = vmatprep.mubr.f32.mxu0 0.0
  %2251 = vmatmul.mubr.f32.gmra.mrb[0].mxu0 %v2109
  %v2252 = vpop.f32.mrb[0].mxu0
  %v2253 = vadd.f32 %v2062, %v2252
  %v2254 = vpop.f32.mrb[0].mxu0
  %2255 = vdwg.mxu0
  %v2256 = vtanh.pop %v2178
  %v2257 = vtanh.pop %v2183
  %v2258 = vtanh.pop %v2188
  %v2259 = vtanh.pop %v2193
  %v2260 = vtanh.pop %v2198
  %v2261 = vtanh.pop %v2203
  %v2262 = vtanh.pop %v2208
  %v2263 = vtanh.pop %v2213
  %v2264 = vtanh.pop %v2218
  %v2265 = vtanh.pop %v2223
  %v2266 = vtanh.pop %v2228
  %v2267 = vtanh.pop %v2233
  %v2268 = vtanh.pop %v2238
  %v2269 = vtanh.pop %v2243
  %v2270 = vtanh.pop %v2248
  %v2271 = vtanh.pop %v2253
  %v2272 = vld [vmem:[%s2] sm:$0x1]
  %v2273 = vlaneseq
  %v2274 = vshrl.u32 %v2273, 7
  %v2275 = vadd.s32 %v2274, 8
  %v2276 = vadd.s32 %v2274, 16
  %v2277 = vadd.s32 %v2274, 24
  %v2278 = vadd.s32 %v2274, 32
  %v2279 = vadd.s32 %v2274, 40
  %v2280 = vadd.s32 %v2274, 48
  %v2281 = vadd.s32 %v2274, 56
  %v2282 = vlaneseq
  %v2283 = vshrl.u32 %v2282, 7
  %v2284 = vsub.s32 0, %v2283
  %v2285 = vrot.slane %v2272, %v2284
  %vm2286 = vcmp.eq.s32.totalorder %v2274, %v2285
  %vm2287 = vcmp.eq.s32.totalorder %v2275, %v2285
  %vm2288 = vcmp.eq.s32.totalorder %v2276, %v2285
  %vm2289 = vcmp.eq.s32.totalorder %v2277, %v2285
  %vm2290 = vcmp.eq.s32.totalorder %v2278, %v2285
  %vm2291 = vcmp.eq.s32.totalorder %v2279, %v2285
  %vm2292 = vcmp.eq.s32.totalorder %v2280, %v2285
  %vm2293 = vcmp.eq.s32.totalorder %v2281, %v2285
  %v2294 = vsel %vm2286, 1, 0
  %v2295 = vsel %vm2287, 1, 0
  %v2296 = vsel %vm2288, 1, 0
  %v2297 = vsel %vm2289, 1, 0
  %v2298 = vsel %vm2290, 1, 0
  %v2299 = vsel %vm2291, 1, 0
  %v2300 = vsel %vm2292, 1, 0
  %v2301 = vsel %vm2293, 1, 0
  %v2302 = vcvt.s32.f32 %v2294
  %v2303 = vcvt.s32.f32 %v2295
  %v2304 = vcvt.s32.f32 %v2296
  %v2305 = vcvt.s32.f32 %v2297
  %v2306 = vcvt.s32.f32 %v2298
  %v2307 = vcvt.s32.f32 %v2299
  %v2308 = vcvt.s32.f32 %v2300
  %v2309 = vcvt.s32.f32 %v2301
  %2310 = vmatprep.subr.mxu0 0.0
  %2311 = vmatpush1.msra.mxu0 %v2256
  %2312 = vmatprep.subr.mxu0 0.0
  %2313 = vmatpush1.msra.mxu0 %v2257
  %2314 = vmatprep.subr.mxu0 0.0
  %2315 = vmatpush1.msra.mxu0 %v2258
  %2316 = vmatprep.subr.mxu0 0.0
  %2317 = vmatpush1.msra.mxu0 %v2259
  %2318 = vmatprep.subr.mxu0 0.0
  %2319 = vmatpush1.msra.mxu0 %v2260
  %2320 = vmatprep.subr.mxu0 0.0
  %2321 = vmatpush1.msra.mxu0 %v2261
  %2322 = vmatprep.subr.mxu0 0.0
  %2323 = vmatpush1.msra.mxu0 %v2262
  %2324 = vmatprep.subr.mxu0 0.0
  %2325 = vmatpush1.msra.mxu0 %v2263
  %2326 = vmatprep.subr.mxu0 0.0
  %2327 = vmatpush1.msra.mxu0 %v2264
  %2328 = vmatprep.subr.mxu0 0.0
  %2329 = vmatpush1.msra.mxu0 %v2265
  %2330 = vmatprep.subr.mxu0 0.0
  %2331 = vmatpush1.msra.mxu0 %v2266
  %2332 = vmatprep.subr.mxu0 0.0
  %2333 = vmatpush1.msra.mxu0 %v2267
  %2334 = vmatprep.subr.mxu0 0.0
  %2335 = vmatpush1.msra.mxu0 %v2268
  %2336 = vmatprep.subr.mxu0 0.0
  %2337 = vmatpush1.msra.mxu0 %v2269
  %2338 = vmatprep.subr.mxu0 0.0
  %2339 = vmatpush1.msra.mxu0 %v2270
  %2340 = vmatprep.subr.mxu0 0.0
  %2341 = vmatpush1.msra.mxu0 %v2271
  %2342 = vmatprep.subr.mxu0 0.0
  %2343 = vmatpush1.msra.mxu0 0.0
  %2344 = vmatprep.subr.mxu0 0.0
  %2345 = vmatpush1.msra.mxu0 0.0
  %2346 = vmatprep.subr.mxu0 0.0
  %2347 = vmatpush1.msra.mxu0 0.0
  %2348 = vmatprep.subr.mxu0 0.0
  %2349 = vmatpush1.msra.mxu0 0.0
  %2350 = vmatprep.subr.mxu0 0.0
  %2351 = vmatpush1.msra.mxu0 0.0
  %2352 = vmatprep.subr.mxu0 0.0
  %2353 = vmatpush1.msra.mxu0 0.0
  %2354 = vmatprep.subr.mxu0 0.0
  %2355 = vmatpush1.msra.mxu0 0.0
  %2356 = vmatprep.subr.mxu0 0.0
  %2357 = vmatpush1.msra.mxu0 0.0
  %2358 = vmatprep.subr.mxu0 0.0
  %2359 = vmatpush1.msra.mxu0 0.0
  %2360 = vmatprep.subr.mxu0 0.0
  %2361 = vmatpush1.msra.mxu0 0.0
  %2362 = vmatprep.subr.mxu0 0.0
  %2363 = vmatpush1.msra.mxu0 0.0
  %2364 = vmatprep.subr.mxu0 0.0
  %2365 = vmatpush1.msra.mxu0 0.0
  %2366 = vmatprep.subr.mxu0 0.0
  %2367 = vmatpush1.msra.mxu0 0.0
  %2368 = vmatprep.subr.mxu0 0.0
  %2369 = vmatpush1.msra.mxu0 0.0
  %2370 = vmatprep.subr.mxu0 0.0
  %2371 = vmatpush1.msra.mxu0 0.0
  %2372 = vmatprep.subr.mxu0 0.0
  %2373 = vmatpush1.msra.mxu0 0.0
  %2374 = vmatprep.mubr.f32.mxu0 0.0
  %2375 = vmatmul.mubr.f32.gmra.mrb[0].mxu0 %v2302
  %v2376 = vpop.f32.mrb[0].mxu0
  %v2377 = vadd.f32 0.0, %v2376
  %v2378 = vpop.f32.mrb[0].mxu0
  %2379 = vmatprep.mubr.f32.mxu0 0.0
  %2380 = vmatmul.mubr.f32.gmra.mrb[0].mxu0 %v2303
  %v2381 = vpop.f32.mrb[0].mxu0
  %v2382 = vadd.f32 0.0, %v2381
  %v2383 = vpop.f32.mrb[0].mxu0
  %2384 = vmatprep.mubr.f32.mxu0 0.0
  %2385 = vmatmul.mubr.f32.gmra.mrb[0].mxu0 %v2304
  %v2386 = vpop.f32.mrb[0].mxu0
  %v2387 = vadd.f32 0.0, %v2386
  %v2388 = vpop.f32.mrb[0].mxu0
  %2389 = vmatprep.mubr.f32.mxu0 0.0
  %2390 = vmatmul.mubr.f32.gmra.mrb[0].mxu0 %v2305
  %v2391 = vpop.f32.mrb[0].mxu0
  %v2392 = vadd.f32 0.0, %v2391
  %v2393 = vpop.f32.mrb[0].mxu0
  %2394 = vmatprep.mubr.f32.mxu0 0.0
  %2395 = vmatmul.mubr.f32.gmra.mrb[0].mxu0 %v2306
  %v2396 = vpop.f32.mrb[0].mxu0
  %v2397 = vadd.f32 0.0, %v2396
  %v2398 = vpop.f32.mrb[0].mxu0
  %2399 = vmatprep.mubr.f32.mxu0 0.0
  %2400 = vmatmul.mubr.f32.gmra.mrb[0].mxu0 %v2307
  %v2401 = vpop.f32.mrb[0].mxu0
  %v2402 = vadd.f32 0.0, %v2401
  %v2403 = vpop.f32.mrb[0].mxu0
  %2404 = vmatprep.mubr.f32.mxu0 0.0
  %2405 = vmatmul.mubr.f32.gmra.mrb[0].mxu0 %v2308
  %v2406 = vpop.f32.mrb[0].mxu0
  %v2407 = vadd.f32 0.0, %v2406
  %v2408 = vpop.f32.mrb[0].mxu0
  %2409 = vmatprep.mubr.f32.mxu0 0.0
  %2410 = vmatmul.mubr.f32.gmra.mrb[0].mxu0 %v2309
  %v2411 = vpop.f32.mrb[0].mxu0
  %v2412 = vadd.f32 0.0, %v2411
  %v2413 = vpop.f32.mrb[0].mxu0
  %2414 = vdwg.mxu0
  %v2415 = vld [vmem:[%s2 + $0x1] sm:$0x1]
  %v2416 = vlaneseq
  %v2417 = vshrl.u32 %v2416, 7
  %v2418 = vsub.s32 0, %v2417
  %v2419 = vrot.slane %v2415, %v2418
  %vm2420 = vcmp.eq.s32.totalorder %v2274, %v2419
  %v2421 = vsel %vm2420, 1, 0
  %v2422 = vcvt.s32.f32 %v2421
  %vm2423 = vcmask 517120
  %v2424 = vsel %vm2423, %v2422, 0.0
  %2425 = vadd.xlane.f32.xlu0 %v2424
  %v2426 = vpop.xlane.xlu0 %2425
  %v2427 = vrcp.pop %v2426
  %v2429 = vsel %vm666, %v2422, 0
  %2431 = vmatprep.subr.mxu0 0.0
  %2432 = vmatpush1.msra.mxu0 %v2377
  %2433 = vmatprep.subr.mxu0 0.0
  %2434 = vmatpush1.msra.mxu0 %v2382
  %2435 = vmatprep.subr.mxu0 0.0
  %2436 = vmatpush1.msra.mxu0 %v2387
  %2437 = vmatprep.subr.mxu0 0.0
  %2438 = vmatpush1.msra.mxu0 %v2392
  %2439 = vmatprep.subr.mxu0 0.0
  %2440 = vmatpush1.msra.mxu0 %v2397
  %2441 = vmatprep.subr.mxu0 0.0
  %2442 = vmatpush1.msra.mxu0 %v2402
  %2443 = vmatprep.subr.mxu0 0.0
  %2444 = vmatpush1.msra.mxu0 %v2407
  %2445 = vmatprep.subr.mxu0 0.0
  %2446 = vmatpush1.msra.mxu0 %v2412
  %2447 = vmatprep.subr.mxu0 0.0
  %2448 = vmatpush1.msra.mxu0 0.0
  %2449 = vmatprep.subr.mxu0 0.0
  %2450 = vmatpush1.msra.mxu0 0.0
  %2451 = vmatprep.subr.mxu0 0.0
  %2452 = vmatpush1.msra.mxu0 0.0
  %2453 = vmatprep.subr.mxu0 0.0
  %2454 = vmatpush1.msra.mxu0 0.0
  %2455 = vmatprep.subr.mxu0 0.0
  %2456 = vmatpush1.msra.mxu0 0.0
  %2457 = vmatprep.subr.mxu0 0.0
  %2458 = vmatpush1.msra.mxu0 0.0
  %2459 = vmatprep.subr.mxu0 0.0
  %2460 = vmatpush1.msra.mxu0 0.0
  %2461 = vmatprep.subr.mxu0 0.0
  %2462 = vmatpush1.msra.mxu0 0.0
  %2463 = vmatprep.subr.mxu0 0.0
  %2464 = vmatpush1.msra.mxu0 0.0
  %2465 = vmatprep.subr.mxu0 0.0
  %2466 = vmatpush1.msra.mxu0 0.0
  %2467 = vmatprep.subr.mxu0 0.0
  %2468 = vmatpush1.msra.mxu0 0.0
  %2469 = vmatprep.subr.mxu0 0.0
  %2470 = vmatpush1.msra.mxu0 0.0
  %2471 = vmatprep.subr.mxu0 0.0
  %2472 = vmatpush1.msra.mxu0 0.0
  %2473 = vmatprep.subr.mxu0 0.0
  %2474 = vmatpush1.msra.mxu0 0.0
  %2475 = vmatprep.subr.mxu0 0.0
  %2476 = vmatpush1.msra.mxu0 0.0
  %2477 = vmatprep.subr.mxu0 0.0
  %2478 = vmatpush1.msra.mxu0 0.0
  %2479 = vmatprep.subr.mxu0 0.0
  %2480 = vmatpush1.msra.mxu0 0.0
  %2481 = vmatprep.subr.mxu0 0.0
  %2482 = vmatpush1.msra.mxu0 0.0
  %2483 = vmatprep.subr.mxu0 0.0
  %2484 = vmatpush1.msra.mxu0 0.0
  %2485 = vmatprep.subr.mxu0 0.0
  %2486 = vmatpush1.msra.mxu0 0.0
  %2487 = vmatprep.subr.mxu0 0.0
  %2488 = vmatpush1.msra.mxu0 0.0
  %2489 = vmatprep.subr.mxu0 0.0
  %2490 = vmatpush1.msra.mxu0 0.0
  %2491 = vmatprep.subr.mxu0 0.0
  %2492 = vmatpush1.msra.mxu0 0.0
  %2493 = vmatprep.subr.mxu0 0.0
  %2494 = vmatpush1.msra.mxu0 0.0
  %2495 = vmatprep.mubr.f32.mxu0 0.0
  %2496 = vmatmul.mubr.f32.gmra.mrb[0].mxu0 %v2429
  %v2497 = vpop.f32.mrb[0].mxu0
  %v2498 = vadd.f32 0.0, %v2497
  %v2499 = vpop.f32.mrb[0].mxu0
  %2500 = vdwg.mxu0
  %v2501 = vmul.f32 %v2498, %v2427
  %2502 = vmatprep.subr.mxu0 0.0
  %2503 = vmatpush1.msra.mxu0 %v145
  %2504 = vmatprep.subr.mxu0 0.0
  %2505 = vmatpush1.msra.mxu0 %v146
  %2506 = vmatprep.subr.mxu0 0.0
  %2507 = vmatpush1.msra.mxu0 %v147
  %2508 = vmatprep.subr.mxu0 0.0
  %2509 = vmatpush1.msra.mxu0 %v148
  %2510 = vmatprep.subr.mxu0 0.0
  %2511 = vmatpush1.msra.mxu0 %v149
  %2512 = vmatprep.subr.mxu0 0.0
  %2513 = vmatpush1.msra.mxu0 %v150
  %2514 = vmatprep.subr.mxu0 0.0
  %2515 = vmatpush1.msra.mxu0 %v151
  %2516 = vmatprep.subr.mxu0 0.0
  %2517 = vmatpush1.msra.mxu0 %v152
  %2518 = vmatprep.subr.mxu0 0.0
  %2519 = vmatpush1.msra.mxu0 0.0
  %2520 = vmatprep.subr.mxu0 0.0
  %2521 = vmatpush1.msra.mxu0 0.0
  %2522 = vmatprep.subr.mxu0 0.0
  %2523 = vmatpush1.msra.mxu0 0.0
  %2524 = vmatprep.subr.mxu0 0.0
  %2525 = vmatpush1.msra.mxu0 0.0
  %2526 = vmatprep.subr.mxu0 0.0
  %2527 = vmatpush1.msra.mxu0 0.0
  %2528 = vmatprep.subr.mxu0 0.0
  %2529 = vmatpush1.msra.mxu0 0.0
  %2530 = vmatprep.subr.mxu0 0.0
  %2531 = vmatpush1.msra.mxu0 0.0
  %2532 = vmatprep.subr.mxu0 0.0
  %2533 = vmatpush1.msra.mxu0 0.0
  %2534 = vmatprep.subr.mxu0 0.0
  %2535 = vmatpush1.msra.mxu0 0.0
  %2536 = vmatprep.subr.mxu0 0.0
  %2537 = vmatpush1.msra.mxu0 0.0
  %2538 = vmatprep.subr.mxu0 0.0
  %2539 = vmatpush1.msra.mxu0 0.0
  %2540 = vmatprep.subr.mxu0 0.0
  %2541 = vmatpush1.msra.mxu0 0.0
  %2542 = vmatprep.subr.mxu0 0.0
  %2543 = vmatpush1.msra.mxu0 0.0
  %2544 = vmatprep.subr.mxu0 0.0
  %2545 = vmatpush1.msra.mxu0 0.0
  %2546 = vmatprep.subr.mxu0 0.0
  %2547 = vmatpush1.msra.mxu0 0.0
  %2548 = vmatprep.subr.mxu0 0.0
  %2549 = vmatpush1.msra.mxu0 0.0
  %2550 = vmatprep.subr.mxu0 0.0
  %2551 = vmatpush1.msra.mxu0 0.0
  %2552 = vmatprep.subr.mxu0 0.0
  %2553 = vmatpush1.msra.mxu0 0.0
  %2554 = vmatprep.subr.mxu0 0.0
  %2555 = vmatpush1.msra.mxu0 0.0
  %2556 = vmatprep.subr.mxu0 0.0
  %2557 = vmatpush1.msra.mxu0 0.0
  %2558 = vmatprep.subr.mxu0 0.0
  %2559 = vmatpush1.msra.mxu0 0.0
  %2560 = vmatprep.subr.mxu0 0.0
  %2561 = vmatpush1.msra.mxu0 0.0
  %2562 = vmatprep.subr.mxu0 0.0
  %2563 = vmatpush1.msra.mxu0 0.0
  %2564 = vmatprep.subr.mxu0 0.0
  %2565 = vmatpush1.msra.mxu0 0.0
  %2566 = vmatprep.mubr.f32.mxu0 0.0
  %2567 = vmatmul.mubr.f32.gmra.mrb[0].mxu0 %v2429
  %v2568 = vpop.f32.mrb[0].mxu0
  %v2569 = vadd.f32 0.0, %v2568
  %v2570 = vpop.f32.mrb[0].mxu0
  %2571 = vdwg.mxu0
  %v2572 = vmul.f32 %v2569, %v2427
  %v2574 = vsel %vm69, %v2572, 0
  %v2577 = vsel %vm181, %v56, 0
  %2579 = vmatprep.subr.mxu0 0.0
  %2580 = vmatpush1.msra.mxu0 %v55
  %2581 = vmatprep.subr.mxu0 0.0
  %2582 = vmatpush1.msra.mxu0 %v2577
  %2583 = vmatprep.subr.mxu0 0.0
  %2584 = vmatpush1.msra.mxu0 0.0
  %2585 = vmatprep.subr.mxu0 0.0
  %2586 = vmatpush1.msra.mxu0 0.0
  %2587 = vmatprep.subr.mxu0 0.0
  %2588 = vmatpush1.msra.mxu0 0.0
  %2589 = vmatprep.subr.mxu0 0.0
  %2590 = vmatpush1.msra.mxu0 0.0
  %2591 = vmatprep.subr.mxu0 0.0
  %2592 = vmatpush1.msra.mxu0 0.0
  %2593 = vmatprep.subr.mxu0 0.0
  %2594 = vmatpush1.msra.mxu0 0.0
  %2595 = vmatprep.subr.mxu0 0.0
  %2596 = vmatpush1.msra.mxu0 0.0
  %2597 = vmatprep.subr.mxu0 0.0
  %2598 = vmatpush1.msra.mxu0 0.0
  %2599 = vmatprep.subr.mxu0 0.0
  %2600 = vmatpush1.msra.mxu0 0.0
  %2601 = vmatprep.subr.mxu0 0.0
  %2602 = vmatpush1.msra.mxu0 0.0
  %2603 = vmatprep.subr.mxu0 0.0
  %2604 = vmatpush1.msra.mxu0 0.0
  %2605 = vmatprep.subr.mxu0 0.0
  %2606 = vmatpush1.msra.mxu0 0.0
  %2607 = vmatprep.subr.mxu0 0.0
  %2608 = vmatpush1.msra.mxu0 0.0
  %2609 = vmatprep.subr.mxu0 0.0
  %2610 = vmatpush1.msra.mxu0 0.0
  %2611 = vmatprep.subr.mxu0 0.0
  %2612 = vmatpush1.msra.mxu0 0.0
  %2613 = vmatprep.subr.mxu0 0.0
  %2614 = vmatpush1.msra.mxu0 0.0
  %2615 = vmatprep.subr.mxu0 0.0
  %2616 = vmatpush1.msra.mxu0 0.0
  %2617 = vmatprep.subr.mxu0 0.0
  %2618 = vmatpush1.msra.mxu0 0.0
  %2619 = vmatprep.subr.mxu0 0.0
  %2620 = vmatpush1.msra.mxu0 0.0
  %2621 = vmatprep.subr.mxu0 0.0
  %2622 = vmatpush1.msra.mxu0 0.0
  %2623 = vmatprep.subr.mxu0 0.0
  %2624 = vmatpush1.msra.mxu0 0.0
  %2625 = vmatprep.subr.mxu0 0.0
  %2626 = vmatpush1.msra.mxu0 0.0
  %2627 = vmatprep.subr.mxu0 0.0
  %2628 = vmatpush1.msra.mxu0 0.0
  %2629 = vmatprep.subr.mxu0 0.0
  %2630 = vmatpush1.msra.mxu0 0.0
  %2631 = vmatprep.subr.mxu0 0.0
  %2632 = vmatpush1.msra.mxu0 0.0
  %2633 = vmatprep.subr.mxu0 0.0
  %2634 = vmatpush1.msra.mxu0 0.0
  %2635 = vmatprep.subr.mxu0 0.0
  %2636 = vmatpush1.msra.mxu0 0.0
  %2637 = vmatprep.subr.mxu0 0.0
  %2638 = vmatpush1.msra.mxu0 0.0
  %2639 = vmatprep.subr.mxu0 0.0
  %2640 = vmatpush1.msra.mxu0 0.0
  %2641 = vmatprep.subr.mxu0 0.0
  %2642 = vmatpush1.msra.mxu0 0.0
  %2643 = vmatprep.mubr.f32.mxu0 0.0
  %2644 = vmatmul.mubr.f32.gmra.mrb[0].mxu0 %v2574
  %v2645 = vpop.f32.mrb[0].mxu0
  %v2646 = vadd.f32 0.0, %v2645
  %v2647 = vpop.f32.mrb[0].mxu0
  %2648 = vdwg.mxu0
  %v2650 = vsel %vm302, %v2501, 0
  %2652 = vmatprep.subr.mxu0 0.0
  %2653 = vmatpush1.msra.mxu0 %v51
  %2654 = vmatprep.subr.mxu0 0.0
  %2655 = vmatpush1.msra.mxu0 %v52
  %2656 = vmatprep.subr.mxu0 0.0
  %2657 = vmatpush1.msra.mxu0 %v53
  %2658 = vmatprep.subr.mxu0 0.0
  %2659 = vmatpush1.msra.mxu0 %v54
  %2660 = vmatprep.subr.mxu0 0.0
  %2661 = vmatpush1.msra.mxu0 0.0
  %2662 = vmatprep.subr.mxu0 0.0
  %2663 = vmatpush1.msra.mxu0 0.0
  %2664 = vmatprep.subr.mxu0 0.0
  %2665 = vmatpush1.msra.mxu0 0.0
  %2666 = vmatprep.subr.mxu0 0.0
  %2667 = vmatpush1.msra.mxu0 0.0
  %2668 = vmatprep.subr.mxu0 0.0
  %2669 = vmatpush1.msra.mxu0 0.0
  %2670 = vmatprep.subr.mxu0 0.0
  %2671 = vmatpush1.msra.mxu0 0.0
  %2672 = vmatprep.subr.mxu0 0.0
  %2673 = vmatpush1.msra.mxu0 0.0
  %2674 = vmatprep.subr.mxu0 0.0
  %2675 = vmatpush1.msra.mxu0 0.0
  %2676 = vmatprep.subr.mxu0 0.0
  %2677 = vmatpush1.msra.mxu0 0.0
  %2678 = vmatprep.subr.mxu0 0.0
  %2679 = vmatpush1.msra.mxu0 0.0
  %2680 = vmatprep.subr.mxu0 0.0
  %2681 = vmatpush1.msra.mxu0 0.0
  %2682 = vmatprep.subr.mxu0 0.0
  %2683 = vmatpush1.msra.mxu0 0.0
  %2684 = vmatprep.subr.mxu0 0.0
  %2685 = vmatpush1.msra.mxu0 0.0
  %2686 = vmatprep.subr.mxu0 0.0
  %2687 = vmatpush1.msra.mxu0 0.0
  %2688 = vmatprep.subr.mxu0 0.0
  %2689 = vmatpush1.msra.mxu0 0.0
  %2690 = vmatprep.subr.mxu0 0.0
  %2691 = vmatpush1.msra.mxu0 0.0
  %2692 = vmatprep.subr.mxu0 0.0
  %2693 = vmatpush1.msra.mxu0 0.0
  %2694 = vmatprep.subr.mxu0 0.0
  %2695 = vmatpush1.msra.mxu0 0.0
  %2696 = vmatprep.subr.mxu0 0.0
  %2697 = vmatpush1.msra.mxu0 0.0
  %2698 = vmatprep.subr.mxu0 0.0
  %2699 = vmatpush1.msra.mxu0 0.0
  %2700 = vmatprep.subr.mxu0 0.0
  %2701 = vmatpush1.msra.mxu0 0.0
  %2702 = vmatprep.subr.mxu0 0.0
  %2703 = vmatpush1.msra.mxu0 0.0
  %2704 = vmatprep.subr.mxu0 0.0
  %2705 = vmatpush1.msra.mxu0 0.0
  %2706 = vmatprep.subr.mxu0 0.0
  %2707 = vmatpush1.msra.mxu0 0.0
  %2708 = vmatprep.subr.mxu0 0.0
  %2709 = vmatpush1.msra.mxu0 0.0
  %2710 = vmatprep.subr.mxu0 0.0
  %2711 = vmatpush1.msra.mxu0 0.0
  %2712 = vmatprep.subr.mxu0 0.0
  %2713 = vmatpush1.msra.mxu0 0.0
  %2714 = vmatprep.subr.mxu0 0.0
  %2715 = vmatpush1.msra.mxu0 0.0
  %2716 = vmatprep.mubr.f32.mxu0 0.0
  %2717 = vmatmul.mubr.f32.gmra.mrb[0].mxu0 %v2650
  %v2718 = vpop.f32.mrb[0].mxu0
  %v2719 = vadd.f32 %v2646, %v2718
  %v2720 = vpop.f32.mrb[0].mxu0
  %2721 = vdwg.mxu0
  %v2722 = vlaneseq
  %v2723 = vshrl.u32 %v2722, 7
  %v2724 = vsub.s32 0, %v2723
  %v2725 = vrot.slane %v67, %v2724
  %v2726 = vadd.f32 %v2719, %v2725
  %v2727 = vmax.f32 %v2726, 0.0
  %v2728 = vlaneseq
  %v2729 = vshrl.u32 %v2728, 7
  %v2730 = vsub.s32 0, %v2729
  %v2731 = vrot.slane %v68, %v2730
  %v2733 = vsel %vm302, %v2727, 0
  %2735 = vmatprep.subr.mxu0 0.0
  %2736 = vmatpush1.msra.mxu0 %v57
  %2737 = vmatprep.subr.mxu0 0.0
  %2738 = vmatpush1.msra.mxu0 %v58
  %2739 = vmatprep.subr.mxu0 0.0
  %2740 = vmatpush1.msra.mxu0 %v59
  %2741 = vmatprep.subr.mxu0 0.0
  %2742 = vmatpush1.msra.mxu0 %v60
  %2743 = vmatprep.subr.mxu0 0.0
  %2744 = vmatpush1.msra.mxu0 0.0
  %2745 = vmatprep.subr.mxu0 0.0
  %2746 = vmatpush1.msra.mxu0 0.0
  %2747 = vmatprep.subr.mxu0 0.0
  %2748 = vmatpush1.msra.mxu0 0.0
  %2749 = vmatprep.subr.mxu0 0.0
  %2750 = vmatpush1.msra.mxu0 0.0
  %2751 = vmatprep.subr.mxu0 0.0
  %2752 = vmatpush1.msra.mxu0 0.0
  %2753 = vmatprep.subr.mxu0 0.0
  %2754 = vmatpush1.msra.mxu0 0.0
  %2755 = vmatprep.subr.mxu0 0.0
  %2756 = vmatpush1.msra.mxu0 0.0
  %2757 = vmatprep.subr.mxu0 0.0
  %2758 = vmatpush1.msra.mxu0 0.0
  %2759 = vmatprep.subr.mxu0 0.0
  %2760 = vmatpush1.msra.mxu0 0.0
  %2761 = vmatprep.subr.mxu0 0.0
  %2762 = vmatpush1.msra.mxu0 0.0
  %2763 = vmatprep.subr.mxu0 0.0
  %2764 = vmatpush1.msra.mxu0 0.0
  %2765 = vmatprep.subr.mxu0 0.0
  %2766 = vmatpush1.msra.mxu0 0.0
  %2767 = vmatprep.subr.mxu0 0.0
  %2768 = vmatpush1.msra.mxu0 0.0
  %2769 = vmatprep.subr.mxu0 0.0
  %2770 = vmatpush1.msra.mxu0 0.0
  %2771 = vmatprep.subr.mxu0 0.0
  %2772 = vmatpush1.msra.mxu0 0.0
  %2773 = vmatprep.subr.mxu0 0.0
  %2774 = vmatpush1.msra.mxu0 0.0
  %2775 = vmatprep.subr.mxu0 0.0
  %2776 = vmatpush1.msra.mxu0 0.0
  %2777 = vmatprep.subr.mxu0 0.0
  %2778 = vmatpush1.msra.mxu0 0.0
  %2779 = vmatprep.subr.mxu0 0.0
  %2780 = vmatpush1.msra.mxu0 0.0
  %2781 = vmatprep.subr.mxu0 0.0
  %2782 = vmatpush1.msra.mxu0 0.0
  %2783 = vmatprep.subr.mxu0 0.0
  %2784 = vmatpush1.msra.mxu0 0.0
  %2785 = vmatprep.subr.mxu0 0.0
  %2786 = vmatpush1.msra.mxu0 0.0
  %2787 = vmatprep.subr.mxu0 0.0
  %2788 = vmatpush1.msra.mxu0 0.0
  %2789 = vmatprep.subr.mxu0 0.0
  %2790 = vmatpush1.msra.mxu0 0.0
  %2791 = vmatprep.subr.mxu0 0.0
  %2792 = vmatpush1.msra.mxu0 0.0
  %2793 = vmatprep.subr.mxu0 0.0
  %2794 = vmatpush1.msra.mxu0 0.0
  %2795 = vmatprep.subr.mxu0 0.0
  %2796 = vmatpush1.msra.mxu0 0.0
  %2797 = vmatprep.subr.mxu0 0.0
  %2798 = vmatpush1.msra.mxu0 0.0
  %2799 = vmatprep.mubr.f32.mxu0 0.0
  %2800 = vmatmul.mubr.f32.gmra.mrb[0].mxu0 %v2733
  %v2801 = vpop.f32.mrb[0].mxu0
  %v2802 = vadd.f32 %v2731, %v2801
  %v2803 = vpop.f32.mrb[0].mxu0
  %2804 = vdwg.mxu0
  %v2805 = vxor.u32 %v2802, 2147483648
  %v2806 = vmul.f32 %v2805, 1.442695
  %v2807 = vpow.pop %v2806
  %v2808 = vadd.f32 %v2807, 1.0
  %v2809 = vrcp.pop %v2808
  %v2810 = vmul.f32 1.0, %v2809
  %vm2811 = vcmask 1024
  %2812 = vst.msk [vmem:[%s4] sm:$0x3] %vm2811, %v2810
  // Predicated region
  $region18: #{tpu_custom_call.1} parent=0 // pred_check
    _
  $region19: #{tpu_custom_call.1} parent=0 // pred_check_branch
    %2814 = sbr.rel (0) target = $region21
  $region20: #{tpu_custom_call.1} parent=0 // pred_region
    _
  $region21: #{tpu_custom_call.1} parent=0 // pred_fallthru
    _
  // Predicated region
  $region22: #{tpu_custom_call.1} parent=0 // pred_check
    _
  $region23: #{tpu_custom_call.1} parent=0 // pred_check_branch
    %2816 = sbr.rel (0) target = $region25
  $region24: #{tpu_custom_call.1} parent=0 // pred_region
    _
  $region25: #{tpu_custom_call.1} parent=0 // pred_fallthru
    _

</llo_original>
